<compile_context>
chip_gen: v5e
topology: v5e:2x2
jax: 0.10.0
libtpu: 0.0.40
codegen_flags: <defaults>
</compile_context>

<pallas_src>
import math

import jax
import jax.numpy as jnp
from jax.experimental import pallas as pl
from jax.experimental.pallas import tpu as pltpu

# ---------------- model config (small, consistent with the module) -----------
VOCAB = 64
VOCAB_PAD = 128            # lane-dense LM head / output store (64 -> 128)
HIDDEN = 32
NUM_LAYERS = 2
NUM_HEADS = 4
HEAD_DIM = HIDDEN // NUM_HEADS
ALL_HEAD = NUM_HEADS * HEAD_DIM      # 32
FFN = 4 * HIDDEN                     # 128
MAX_SEQ = 16
BATCH = 2
SEQ = 8
LN_EPS = 1e-12
ATTN_SCALE = 1.0 / math.sqrt(HEAD_DIM)
NEG_BIG = -1e30

# layout of the packed [*, HIDDEN] vector slab ("hvecs")
ROW_TYPE = 0          # token-type embedding row (token_type_ids == 0)
ROW_LN_EMB_G = 1
ROW_LN_EMB_B = 2
ROW_LAYER0 = 3
ROWS_PER_LAYER = 6    # per layer: bo, ln1_g, ln1_b, b2, ln2_g, ln2_b
NUM_HVEC_ROWS = ROW_LAYER0 + NUM_LAYERS * ROWS_PER_LAYER   # 15


# ---------------- in-kernel helpers ------------------------------------------


def _layer_norm(x, g, b):
  mu = jnp.mean(x, axis=-1, keepdims=True)
  xc = x - mu
  var = jnp.mean(xc * xc, axis=-1, keepdims=True)
  return xc * jax.lax.rsqrt(var + LN_EPS) * g + b


def _softmax_approx(x):
  # attention-internal softmax: approx reciprocal runs on the otherwise-idle
  # EUP; the small relative error is washed out by the following LayerNorms.
  m = jnp.max(x, axis=-1, keepdims=True)
  e = jnp.exp(x - m)
  return e * pl.reciprocal(jnp.sum(e, axis=-1, keepdims=True), approx=True)


def _softmax_exact(x):
  # final LM-head softmax must be exact so output rows sum to 1.
  m = jnp.max(x, axis=-1, keepdims=True)
  e = jnp.exp(x - m)
  return e / jnp.sum(e, axis=-1, keepdims=True)


def _gelu(x):
  # tanh-approx GELU (EUP tanh) instead of the VALU erf polynomial.
  # TODO(synk): exact erf GELU (as in HF Bert) differs by ~1e-3 relative.
  c = math.sqrt(2.0 / math.pi)
  return 0.5 * x * (1.0 + jnp.tanh(c * (x + 0.044715 * x * x * x)))


def _split_heads(x2d, off):
  # [S, 3*NH*HD] lane-slab -> per-head [NH, S, HD] (static lane slices + stack)
  return jnp.stack(
      [x2d[:, off + n * HEAD_DIM: off + (n + 1) * HEAD_DIM]
       for n in range(NUM_HEADS)], axis=0)


# ---------------- the kernel ---------------------------------------------------


def bert_lm_kernel(ids_ref, word_emb_ref, pos_emb_ref, hvec_ref,
                   wqkv_ref, bqkv_ref, wo_ref, w1_ref, b1_ref, w2_ref,
                   wlm_ref, blm_ref, out_ref):
  seq = ids_ref.shape[0]                     # one sequence per grid step

  def hrow(i):                               # [1, HIDDEN] row of the packed slab
    return hvec_ref[pl.ds(i, 1), :]

  # ---- fused embedding: one-hot MXU gather + positional rows + type emb -----
  tok = ids_ref[...]                                            # [S, 1] int32
  vocab_iota = jax.lax.broadcasted_iota(jnp.int32, (seq, VOCAB), 1)
  onehot = (vocab_iota == tok).astype(jnp.float32)              # [S, V]
  emb = jnp.dot(onehot, word_emb_ref[...],
                preferred_element_type=jnp.float32)             # [S, H]
  emb = emb + pos_emb_ref[...] + hrow(ROW_TYPE)                 # pos block is [S, H]
  h = _layer_norm(emb, hrow(ROW_LN_EMB_G), hrow(ROW_LN_EMB_B))  # [S, H]

  # ---- additive causal mask, hoisted once, broadcast over heads -------------
  r = jax.lax.broadcasted_iota(jnp.int32, (seq, seq), 0)
  c = jax.lax.broadcasted_iota(jnp.int32, (seq, seq), 1)
  addmask = jnp.where(c <= r, 0.0, NEG_BIG).astype(jnp.float32)  # [S, S]
  addmask = jnp.broadcast_to(addmask[None, :, :], (NUM_HEADS, seq, seq))

  for l in range(NUM_LAYERS):
    base = ROW_LAYER0 + l * ROWS_PER_LAYER

    # --- multi-head causal self-attention ------------------------------------
    # fused QKV: single [S,32]@[32,96] matmul (ATTN_SCALE pre-folded into Q cols)
    qkv = jnp.dot(h, wqkv_ref[l],
                  preferred_element_type=jnp.float32) + bqkv_ref[l]   # [S, 96]
    q = _split_heads(qkv, 0)                                          # [NH, S, HD]
    k = _split_heads(qkv, ALL_HEAD)
    v = _split_heads(qkv, 2 * ALL_HEAD)

    scores = jnp.einsum('nqd,nkd->nqk', q, k,
                        preferred_element_type=jnp.float32) + addmask  # [NH,S,S]
    probs = _softmax_approx(scores)
    ctx = jnp.einsum('nqk,nkd->nqd', probs, v,
                     preferred_element_type=jnp.float32)               # [NH,S,HD]

    # single output projection: concat heads along lanes -> one K=32 matmul
    ctx_cat = jnp.concatenate([ctx[n] for n in range(NUM_HEADS)],
                              axis=-1)                                 # [S, NH*HD]
    attn = jnp.dot(ctx_cat, wo_ref[l],
                   preferred_element_type=jnp.float32) + hrow(base + 0)
    h = _layer_norm(h + attn, hrow(base + 1), hrow(base + 2))

    # --- feed-forward ---------------------------------------------------------
    ffn = jnp.dot(h, w1_ref[l], preferred_element_type=jnp.float32) + b1_ref[l]
    ffn = _gelu(ffn)
    ffn = jnp.dot(ffn, w2_ref[l],
                  preferred_element_type=jnp.float32) + hrow(base + 3)
    h = _layer_norm(h + ffn, hrow(base + 4), hrow(base + 5))

  # --- LM head + EXACT softmax over the (lane-dense, padded) vocab ------------
  logits = jnp.dot(h, wlm_ref[...],
                   preferred_element_type=jnp.float32) + blm_ref[...]
  out_ref[...] = _softmax_exact(logits)                                # [S, 128]


# ---------------- parameters & wrapper ----------------------------------------


def init_params(key):
  std = 0.02
  keys = iter(jax.random.split(key, 32))

  def normal(shape):
    return std * jax.random.normal(next(keys), shape, dtype=jnp.float32)

  p = {}
  p["word_emb"] = normal((VOCAB, HIDDEN))
  p["pos_emb"] = normal((MAX_SEQ, HIDDEN))

  # fused QKV weight: columns = [Q heads | K heads | V heads], head-major.
  # ATTN_SCALE folded into the Q columns ONCE at init time.
  wq = normal((NUM_LAYERS, HIDDEN, ALL_HEAD)) * ATTN_SCALE
  wk = normal((NUM_LAYERS, HIDDEN, ALL_HEAD))
  wv = normal((NUM_LAYERS, HIDDEN, ALL_HEAD))
  p["Wqkv"] = jnp.concatenate([wq, wk, wv], axis=-1)            # [L, H, 96]
  p["bqkv"] = jnp.zeros((NUM_LAYERS, 1, 3 * ALL_HEAD), jnp.float32)

  p["Wo"] = normal((NUM_LAYERS, ALL_HEAD, HIDDEN))              # acts on concat(heads)
  p["W1"] = normal((NUM_LAYERS, HIDDEN, FFN))
  p["b1"] = jnp.zeros((NUM_LAYERS, 1, FFN), jnp.float32)
  p["W2"] = normal((NUM_LAYERS, FFN, HIDDEN))

  # packed [*, HIDDEN] vector slab: type_emb, embedding-LN gamma/beta, then per
  # layer (bo, ln1_g, ln1_b, b2, ln2_g, ln2_b).
  rows = [normal((1, HIDDEN)),                        # type_emb
          jnp.ones((1, HIDDEN), jnp.float32),         # ln_emb gamma
          jnp.zeros((1, HIDDEN), jnp.float32)]        # ln_emb beta
  for _ in range(NUM_LAYERS):
    rows.append(jnp.zeros((1, HIDDEN), jnp.float32))  # bo
    rows.append(jnp.ones((1, HIDDEN), jnp.float32))   # ln1 gamma
    rows.append(jnp.zeros((1, HIDDEN), jnp.float32))  # ln1 beta
    rows.append(jnp.zeros((1, HIDDEN), jnp.float32))  # b2
    rows.append(jnp.ones((1, HIDDEN), jnp.float32))   # ln2 gamma
    rows.append(jnp.zeros((1, HIDDEN), jnp.float32))  # ln2 beta
  p["hvecs"] = jnp.concatenate(rows, axis=0)          # [15, HIDDEN]
  assert p["hvecs"].shape[0] == NUM_HVEC_ROWS

  # LM head padded 64 -> 128 lanes: padded weight cols 0, padded bias cols
  # -1e30 so padded logits exp() to exactly 0 and the softmax over the real 64
  # entries is unchanged.
  w_lm = jnp.zeros((HIDDEN, VOCAB_PAD), jnp.float32)
  p["Wlm"] = w_lm.at[:, :VOCAB].set(normal((HIDDEN, VOCAB)))
  b_lm = jnp.full((1, VOCAB_PAD), NEG_BIG, jnp.float32)
  p["blm"] = b_lm.at[:, :VOCAB].set(0.0)
  return p


# order of weight arrays fed to the kernel (after ids)
WEIGHT_ORDER = ["word_emb", "pos_emb", "hvecs", "Wqkv", "bqkv", "Wo",
                "W1", "b1", "W2", "Wlm", "blm"]


@jax.jit
def bert_lm_forward(ids, params):
  b, s = ids.shape
  bs = b * s
  ids_flat = ids.reshape(bs, 1).astype(jnp.int32)

  # grid=(B,): one sequence per program; on v7x the batch is split across the
  # two TensorCores ("parallel"); on v5e/v6e the extra grid step costs ~0.35us.
  in_specs = [pl.BlockSpec((s, 1), lambda i: (i, 0))]        # ids: per-sequence
  weight_arrs = []
  for name in WEIGHT_ORDER:
    arr = params[name]
    if name == "pos_emb":
      # hand the kernel only the first `s` position rows.
      spec = pl.BlockSpec((s, HIDDEN), lambda i: (0, 0))
    else:
      nd = arr.ndim
      # constant block index -> weight blocks stay resident, no re-DMA per step.
      spec = pl.BlockSpec(arr.shape, lambda i, nd=nd: (0,) * nd)
    in_specs.append(spec)
    weight_arrs.append(arr)

  out = pl.pallas_call(
      bert_lm_kernel,
      out_shape=jax.ShapeDtypeStruct((bs, VOCAB_PAD), jnp.float32),
      grid=(b,),
      in_specs=in_specs,
      out_specs=pl.BlockSpec((s, VOCAB_PAD), lambda i: (i, 0)),
      compiler_params=pltpu.CompilerParams(
          dimension_semantics=("parallel",)),
  )(ids_flat, *weight_arrs)

  # un-pad vocab and restore [B, S, VOCAB]
  return out.reshape(b, s, VOCAB_PAD)[:, :, :VOCAB]


if __name__ == "__main__":
  key = jax.random.PRNGKey(0)
  k_ids, k_params = jax.random.split(key)
  ids = jax.random.randint(k_ids, (BATCH, SEQ), 0, VOCAB, dtype=jnp.int32)
  params = init_params(k_params)

  probs = bert_lm_forward(ids, params)
  jax.block_until_ready(probs)

  assert probs.shape == (BATCH, SEQ, VOCAB)
  assert bool(jnp.all(jnp.isfinite(probs)))
  # final softmax is exact, so rows sum to 1 within f32 rounding
  assert bool(jnp.allclose(jnp.sum(probs, axis=-1), 1.0, atol=1e-4))
  print("KERNEL_OK")
</pallas_src>

<mosaic_0001>
module attributes {stable_mosaic.version = 11 : i64} {
  func.func @bert_lm_kernel(%arg0: i32, %arg1: memref<8x1xi32, #tpu.memory_space<vmem>>, %arg2: memref<64x32xf32, #tpu.memory_space<vmem>>, %arg3: memref<8x32xf32, #tpu.memory_space<vmem>>, %arg4: memref<15x32xf32, #tpu.memory_space<vmem>>, %arg5: memref<2x32x96xf32, #tpu.memory_space<vmem>>, %arg6: memref<2x1x96xf32, #tpu.memory_space<vmem>>, %arg7: memref<2x32x32xf32, #tpu.memory_space<vmem>>, %arg8: memref<2x32x128xf32, #tpu.memory_space<vmem>>, %arg9: memref<2x1x128xf32, #tpu.memory_space<vmem>>, %arg10: memref<2x128x32xf32, #tpu.memory_space<vmem>>, %arg11: memref<32x128xf32, #tpu.memory_space<vmem>>, %arg12: memref<1x128xf32, #tpu.memory_space<vmem>>, %arg13: memref<8x128xf32, #tpu.memory_space<vmem>>) attributes {dimension_semantics = [#tpu.dimension_semantics<parallel>], iteration_bounds = array<i64: 2>, scalar_prefetch = 0 : i64, scratch_operands = 0 : i64, tpu.core_type = #tpu.core_type<tc>, window_params = [{transform_indices = @transform_0, window_bounds = array<i64: 8, 1>}, {pipeline_mode = #tpu.pipeline_mode<synchronous>, transform_indices = @transform_1, window_bounds = array<i64: 64, 32>}, {transform_indices = @transform_2, window_bounds = array<i64: 8, 32>}, {pipeline_mode = #tpu.pipeline_mode<synchronous>, transform_indices = @transform_3, window_bounds = array<i64: 15, 32>}, {pipeline_mode = #tpu.pipeline_mode<synchronous>, transform_indices = @transform_4, window_bounds = array<i64: 2, 32, 96>}, {pipeline_mode = #tpu.pipeline_mode<synchronous>, transform_indices = @transform_5, window_bounds = array<i64: 2, 1, 96>}, {pipeline_mode = #tpu.pipeline_mode<synchronous>, transform_indices = @transform_6, window_bounds = array<i64: 2, 32, 32>}, {pipeline_mode = #tpu.pipeline_mode<synchronous>, transform_indices = @transform_7, window_bounds = array<i64: 2, 32, 128>}, {pipeline_mode = #tpu.pipeline_mode<synchronous>, transform_indices = @transform_8, window_bounds = array<i64: 2, 1, 128>}, {pipeline_mode = #tpu.pipeline_mode<synchronous>, transform_indices = @transform_9, window_bounds = array<i64: 2, 128, 32>}, {pipeline_mode = #tpu.pipeline_mode<synchronous>, transform_indices = @transform_10, window_bounds = array<i64: 32, 128>}, {pipeline_mode = #tpu.pipeline_mode<synchronous>, transform_indices = @transform_11, window_bounds = array<i64: 1, 128>}, {transform_indices = @transform_12, window_bounds = array<i64: 8, 128>}]} {
    %c0 = arith.constant 0 : index
    %c0_0 = arith.constant 0 : index
    %0 = vector.load %arg1[%c0, %c0_0] : memref<8x1xi32, #tpu.memory_space<vmem>>, vector<8x1xi32>
    %1 = tpu.iota {dimensions = array<i32: 1>} : vector<8x64xi32>
    %2 = vector.broadcast %0 : vector<8x1xi32> to vector<8x64xi32>
    %3 = arith.cmpi eq, %1, %2 : vector<8x64xi32>
    %4 = arith.extui %3 : vector<8x64xi1> to vector<8x64xi32>
    %5 = arith.sitofp %4 : vector<8x64xi32> to vector<8x64xf32>
    %c0_1 = arith.constant 0 : index
    %c0_2 = arith.constant 0 : index
    %6 = vector.load %arg2[%c0_1, %c0_2] : memref<64x32xf32, #tpu.memory_space<vmem>>, vector<64x32xf32>
    %cst = arith.constant dense<0.000000e+00> : vector<8x32xf32>
    %7 = tpu.matmul %5, %6, %cst {dimension_numbers = #tpu.dot_dimension_numbers<[1], [0], [0], [1], [0, 0, 1, 1], [], []>} : vector<8x64xf32>, vector<64x32xf32>, vector<8x32xf32> -> vector<8x32xf32>
    %c0_3 = arith.constant 0 : index
    %c0_4 = arith.constant 0 : index
    %8 = vector.load %arg3[%c0_3, %c0_4] : memref<8x32xf32, #tpu.memory_space<vmem>>, vector<8x32xf32>
    %9 = arith.addf %7, %8 : vector<8x32xf32>
    %c0_5 = arith.constant 0 : index
    %c0_6 = arith.constant 0 : index
    %10 = vector.load %arg4[%c0_5, %c0_6] : memref<15x32xf32, #tpu.memory_space<vmem>>, vector<1x32xf32>
    %11 = vector.broadcast %10 : vector<1x32xf32> to vector<8x32xf32>
    %12 = arith.addf %9, %11 : vector<8x32xf32>
    %c1 = arith.constant 1 : index
    %c0_7 = arith.constant 0 : index
    %13 = vector.load %arg4[%c1, %c0_7] : memref<15x32xf32, #tpu.memory_space<vmem>>, vector<1x32xf32>
    %c2 = arith.constant 2 : index
    %c0_8 = arith.constant 0 : index
    %14 = vector.load %arg4[%c2, %c0_8] : memref<15x32xf32, #tpu.memory_space<vmem>>, vector<1x32xf32>
    %cst_9 = arith.constant dense<0.000000e+00> : vector<8xf32>
    %15 = vector.multi_reduction <add>, %12, %cst_9 [1] : vector<8x32xf32> to vector<8xf32>
    %16 = vector.shape_cast %15 : vector<8xf32> to vector<8x1xf32>
    %cst_10 = arith.constant 3.200000e+01 : f32
    %17 = vector.broadcast %cst_10 : f32 to vector<8x1xf32>
    %18 = arith.divf %16, %17 : vector<8x1xf32>
    %19 = vector.broadcast %18 : vector<8x1xf32> to vector<8x32xf32>
    %20 = arith.subf %12, %19 : vector<8x32xf32>
    %21 = arith.mulf %20, %20 : vector<8x32xf32>
    %cst_11 = arith.constant dense<0.000000e+00> : vector<8xf32>
    %22 = vector.multi_reduction <add>, %21, %cst_11 [1] : vector<8x32xf32> to vector<8xf32>
    %23 = vector.shape_cast %22 : vector<8xf32> to vector<8x1xf32>
    %cst_12 = arith.constant 3.200000e+01 : f32
    %24 = vector.broadcast %cst_12 : f32 to vector<8x1xf32>
    %25 = arith.divf %23, %24 : vector<8x1xf32>
    %cst_13 = arith.constant 9.99999996E-13 : f32
    %26 = vector.broadcast %cst_13 : f32 to vector<8x1xf32>
    %27 = arith.addf %25, %26 : vector<8x1xf32>
    %28 = math.rsqrt %27 : vector<8x1xf32>
    %29 = vector.broadcast %28 : vector<8x1xf32> to vector<8x32xf32>
    %30 = arith.mulf %20, %29 : vector<8x32xf32>
    %31 = vector.broadcast %13 : vector<1x32xf32> to vector<8x32xf32>
    %32 = arith.mulf %30, %31 : vector<8x32xf32>
    %33 = vector.broadcast %14 : vector<1x32xf32> to vector<8x32xf32>
    %34 = arith.addf %32, %33 : vector<8x32xf32>
    %35 = tpu.iota {dimensions = array<i32: 0>} : vector<8x8xi32>
    %36 = tpu.iota {dimensions = array<i32: 1>} : vector<8x8xi32>
    %37 = arith.cmpi sle, %36, %35 : vector<8x8xi32>
    %cst_14 = arith.constant 0.000000e+00 : f32
    %cst_15 = arith.constant -1.000000e+30 : f32
    %38 = vector.broadcast %cst_14 : f32 to vector<8x8xf32>
    %39 = vector.broadcast %cst_15 : f32 to vector<8x8xf32>
    %40 = arith.select %37, %38, %39 : vector<8x8xi1>, vector<8x8xf32>
    %41 = vector.shape_cast %40 : vector<8x8xf32> to vector<1x8x8xf32>
    %42 = vector.shape_cast %41 : vector<1x8x8xf32> to vector<1x8x8xf32>
    %43 = vector.broadcast %42 : vector<1x8x8xf32> to vector<4x8x8xf32>
    %c0_16 = arith.constant 0 : index
    %c0_17 = arith.constant 0 : index
    %c0_18 = arith.constant 0 : index
    %44 = vector.load %arg5[%c0_16, %c0_17, %c0_18] : memref<2x32x96xf32, #tpu.memory_space<vmem>>, vector<1x32x96xf32>
    %45 = vector.shape_cast %44 : vector<1x32x96xf32> to vector<32x96xf32>
    %cst_19 = arith.constant dense<0.000000e+00> : vector<8x96xf32>
    %46 = tpu.matmul %34, %45, %cst_19 {dimension_numbers = #tpu.dot_dimension_numbers<[1], [0], [0], [1], [0, 0, 1, 1], [], []>} : vector<8x32xf32>, vector<32x96xf32>, vector<8x96xf32> -> vector<8x96xf32>
    %c0_20 = arith.constant 0 : index
    %c0_21 = arith.constant 0 : index
    %c0_22 = arith.constant 0 : index
    %47 = vector.load %arg6[%c0_20, %c0_21, %c0_22] : memref<2x1x96xf32, #tpu.memory_space<vmem>>, vector<1x1x96xf32>
    %48 = vector.shape_cast %47 : vector<1x1x96xf32> to vector<1x96xf32>
    %49 = vector.broadcast %48 : vector<1x96xf32> to vector<8x96xf32>
    %50 = arith.addf %46, %49 : vector<8x96xf32>
    %51 = vector.extract_strided_slice %50 {offsets = [0, 0], sizes = [8, 8], strides = [1, 1]} : vector<8x96xf32> to vector<8x8xf32>
    %52 = vector.extract_strided_slice %50 {offsets = [0, 8], sizes = [8, 8], strides = [1, 1]} : vector<8x96xf32> to vector<8x8xf32>
    %53 = vector.extract_strided_slice %50 {offsets = [0, 16], sizes = [8, 8], strides = [1, 1]} : vector<8x96xf32> to vector<8x8xf32>
    %54 = vector.extract_strided_slice %50 {offsets = [0, 24], sizes = [8, 8], strides = [1, 1]} : vector<8x96xf32> to vector<8x8xf32>
    %55 = vector.shape_cast %51 : vector<8x8xf32> to vector<1x8x8xf32>
    %56 = vector.shape_cast %52 : vector<8x8xf32> to vector<1x8x8xf32>
    %57 = vector.shape_cast %53 : vector<8x8xf32> to vector<1x8x8xf32>
    %58 = vector.shape_cast %54 : vector<8x8xf32> to vector<1x8x8xf32>
    %59 = tpu.concatenate %55, %56, %57, %58 in 0 : vector<1x8x8xf32>, vector<1x8x8xf32>, vector<1x8x8xf32>, vector<1x8x8xf32> -> vector<4x8x8xf32>
    %60 = vector.extract_strided_slice %50 {offsets = [0, 32], sizes = [8, 8], strides = [1, 1]} : vector<8x96xf32> to vector<8x8xf32>
    %61 = vector.extract_strided_slice %50 {offsets = [0, 40], sizes = [8, 8], strides = [1, 1]} : vector<8x96xf32> to vector<8x8xf32>
    %62 = vector.extract_strided_slice %50 {offsets = [0, 48], sizes = [8, 8], strides = [1, 1]} : vector<8x96xf32> to vector<8x8xf32>
    %63 = vector.extract_strided_slice %50 {offsets = [0, 56], sizes = [8, 8], strides = [1, 1]} : vector<8x96xf32> to vector<8x8xf32>
    %64 = vector.shape_cast %60 : vector<8x8xf32> to vector<1x8x8xf32>
    %65 = vector.shape_cast %61 : vector<8x8xf32> to vector<1x8x8xf32>
    %66 = vector.shape_cast %62 : vector<8x8xf32> to vector<1x8x8xf32>
    %67 = vector.shape_cast %63 : vector<8x8xf32> to vector<1x8x8xf32>
    %68 = tpu.concatenate %64, %65, %66, %67 in 0 : vector<1x8x8xf32>, vector<1x8x8xf32>, vector<1x8x8xf32>, vector<1x8x8xf32> -> vector<4x8x8xf32>
    %69 = vector.extract_strided_slice %50 {offsets = [0, 64], sizes = [8, 8], strides = [1, 1]} : vector<8x96xf32> to vector<8x8xf32>
    %70 = vector.extract_strided_slice %50 {offsets = [0, 72], sizes = [8, 8], strides = [1, 1]} : vector<8x96xf32> to vector<8x8xf32>
    %71 = vector.extract_strided_slice %50 {offsets = [0, 80], sizes = [8, 8], strides = [1, 1]} : vector<8x96xf32> to vector<8x8xf32>
    %72 = vector.extract_strided_slice %50 {offsets = [0, 88], sizes = [8, 8], strides = [1, 1]} : vector<8x96xf32> to vector<8x8xf32>
    %73 = vector.shape_cast %69 : vector<8x8xf32> to vector<1x8x8xf32>
    %74 = vector.shape_cast %70 : vector<8x8xf32> to vector<1x8x8xf32>
    %75 = vector.shape_cast %71 : vector<8x8xf32> to vector<1x8x8xf32>
    %76 = vector.shape_cast %72 : vector<8x8xf32> to vector<1x8x8xf32>
    %77 = tpu.concatenate %73, %74, %75, %76 in 0 : vector<1x8x8xf32>, vector<1x8x8xf32>, vector<1x8x8xf32>, vector<1x8x8xf32> -> vector<4x8x8xf32>
    "tpu.trace_start"() <{level = 10 : i32, message = "nqd,nkd->nqk"}> : () -> ()
    %cst_23 = arith.constant dense<0.000000e+00> : vector<4x8x8xf32>
    %78 = tpu.matmul %59, %68, %cst_23 {dimension_numbers = #tpu.dot_dimension_numbers<[2], [2], [1], [1], [0, 0, 0, 1, 1, 1], [0], [0]>} : vector<4x8x8xf32>, vector<4x8x8xf32>, vector<4x8x8xf32> -> vector<4x8x8xf32>
    "tpu.trace_stop"() : () -> ()
    %79 = arith.addf %78, %43 : vector<4x8x8xf32>
    %cst_24 = arith.constant dense<0xFF800000> : vector<4x8xf32>
    %80 = vector.multi_reduction <maximumf>, %79, %cst_24 [2] : vector<4x8x8xf32> to vector<4x8xf32>
    %81 = vector.shape_cast %80 : vector<4x8xf32> to vector<4x8x1xf32>
    %82 = vector.broadcast %81 : vector<4x8x1xf32> to vector<4x8x8xf32>
    %83 = arith.subf %79, %82 : vector<4x8x8xf32>
    %84 = math.exp %83 : vector<4x8x8xf32>
    %cst_25 = arith.constant dense<0.000000e+00> : vector<4x8xf32>
    %85 = vector.multi_reduction <add>, %84, %cst_25 [2] : vector<4x8x8xf32> to vector<4x8xf32>
    %86 = vector.shape_cast %85 : vector<4x8xf32> to vector<4x8x1xf32>
    %87 = tpu.reciprocal %86 {approx = true} : vector<4x8x1xf32> -> vector<4x8x1xf32>
    %88 = vector.broadcast %87 : vector<4x8x1xf32> to vector<4x8x8xf32>
    %89 = arith.mulf %84, %88 : vector<4x8x8xf32>
    "tpu.trace_start"() <{level = 10 : i32, message = "nqk,nkd->nqd"}> : () -> ()
    %cst_26 = arith.constant dense<0.000000e+00> : vector<4x8x8xf32>
    %90 = tpu.matmul %89, %77, %cst_26 {dimension_numbers = #tpu.dot_dimension_numbers<[2], [1], [1], [2], [0, 0, 0, 1, 1, 2], [0], [0]>} : vector<4x8x8xf32>, vector<4x8x8xf32>, vector<4x8x8xf32> -> vector<4x8x8xf32>
    "tpu.trace_stop"() : () -> ()
    %91 = vector.extract_strided_slice %90 {offsets = [0, 0, 0], sizes = [1, 8, 8], strides = [1, 1, 1]} : vector<4x8x8xf32> to vector<1x8x8xf32>
    %92 = vector.shape_cast %91 : vector<1x8x8xf32> to vector<8x8xf32>
    %93 = vector.extract_strided_slice %90 {offsets = [1, 0, 0], sizes = [1, 8, 8], strides = [1, 1, 1]} : vector<4x8x8xf32> to vector<1x8x8xf32>
    %94 = vector.shape_cast %93 : vector<1x8x8xf32> to vector<8x8xf32>
    %95 = vector.extract_strided_slice %90 {offsets = [2, 0, 0], sizes = [1, 8, 8], strides = [1, 1, 1]} : vector<4x8x8xf32> to vector<1x8x8xf32>
    %96 = vector.shape_cast %95 : vector<1x8x8xf32> to vector<8x8xf32>
    %97 = vector.extract_strided_slice %90 {offsets = [3, 0, 0], sizes = [1, 8, 8], strides = [1, 1, 1]} : vector<4x8x8xf32> to vector<1x8x8xf32>
    %98 = vector.shape_cast %97 : vector<1x8x8xf32> to vector<8x8xf32>
    %99 = tpu.concatenate %92, %94, %96, %98 in 1 : vector<8x8xf32>, vector<8x8xf32>, vector<8x8xf32>, vector<8x8xf32> -> vector<8x32xf32>
    %c0_27 = arith.constant 0 : index
    %c0_28 = arith.constant 0 : index
    %c0_29 = arith.constant 0 : index
    %100 = vector.load %arg7[%c0_27, %c0_28, %c0_29] : memref<2x32x32xf32, #tpu.memory_space<vmem>>, vector<1x32x32xf32>
    %101 = vector.shape_cast %100 : vector<1x32x32xf32> to vector<32x32xf32>
    %cst_30 = arith.constant dense<0.000000e+00> : vector<8x32xf32>
    %102 = tpu.matmul %99, %101, %cst_30 {dimension_numbers = #tpu.dot_dimension_numbers<[1], [0], [0], [1], [0, 0, 1, 1], [], []>} : vector<8x32xf32>, vector<32x32xf32>, vector<8x32xf32> -> vector<8x32xf32>
    %c3 = arith.constant 3 : index
    %c0_31 = arith.constant 0 : index
    %103 = vector.load %arg4[%c3, %c0_31] : memref<15x32xf32, #tpu.memory_space<vmem>>, vector<1x32xf32>
    %104 = vector.broadcast %103 : vector<1x32xf32> to vector<8x32xf32>
    %105 = arith.addf %102, %104 : vector<8x32xf32>
    %106 = arith.addf %34, %105 : vector<8x32xf32>
    %c4 = arith.constant 4 : index
    %c0_32 = arith.constant 0 : index
    %107 = vector.load %arg4[%c4, %c0_32] : memref<15x32xf32, #tpu.memory_space<vmem>>, vector<1x32xf32>
    %c5 = arith.constant 5 : index
    %c0_33 = arith.constant 0 : index
    %108 = vector.load %arg4[%c5, %c0_33] : memref<15x32xf32, #tpu.memory_space<vmem>>, vector<1x32xf32>
    %cst_34 = arith.constant dense<0.000000e+00> : vector<8xf32>
    %109 = vector.multi_reduction <add>, %106, %cst_34 [1] : vector<8x32xf32> to vector<8xf32>
    %110 = vector.shape_cast %109 : vector<8xf32> to vector<8x1xf32>
    %cst_35 = arith.constant 3.200000e+01 : f32
    %111 = vector.broadcast %cst_35 : f32 to vector<8x1xf32>
    %112 = arith.divf %110, %111 : vector<8x1xf32>
    %113 = vector.broadcast %112 : vector<8x1xf32> to vector<8x32xf32>
    %114 = arith.subf %106, %113 : vector<8x32xf32>
    %115 = arith.mulf %114, %114 : vector<8x32xf32>
    %cst_36 = arith.constant dense<0.000000e+00> : vector<8xf32>
    %116 = vector.multi_reduction <add>, %115, %cst_36 [1] : vector<8x32xf32> to vector<8xf32>
    %117 = vector.shape_cast %116 : vector<8xf32> to vector<8x1xf32>
    %cst_37 = arith.constant 3.200000e+01 : f32
    %118 = vector.broadcast %cst_37 : f32 to vector<8x1xf32>
    %119 = arith.divf %117, %118 : vector<8x1xf32>
    %cst_38 = arith.constant 9.99999996E-13 : f32
    %120 = vector.broadcast %cst_38 : f32 to vector<8x1xf32>
    %121 = arith.addf %119, %120 : vector<8x1xf32>
    %122 = math.rsqrt %121 : vector<8x1xf32>
    %123 = vector.broadcast %122 : vector<8x1xf32> to vector<8x32xf32>
    %124 = arith.mulf %114, %123 : vector<8x32xf32>
    %125 = vector.broadcast %107 : vector<1x32xf32> to vector<8x32xf32>
    %126 = arith.mulf %124, %125 : vector<8x32xf32>
    %127 = vector.broadcast %108 : vector<1x32xf32> to vector<8x32xf32>
    %128 = arith.addf %126, %127 : vector<8x32xf32>
    %c0_39 = arith.constant 0 : index
    %c0_40 = arith.constant 0 : index
    %c0_41 = arith.constant 0 : index
    %129 = vector.load %arg8[%c0_39, %c0_40, %c0_41] : memref<2x32x128xf32, #tpu.memory_space<vmem>>, vector<1x32x128xf32>
    %130 = vector.shape_cast %129 : vector<1x32x128xf32> to vector<32x128xf32>
    %cst_42 = arith.constant dense<0.000000e+00> : vector<8x128xf32>
    %131 = tpu.matmul %128, %130, %cst_42 {dimension_numbers = #tpu.dot_dimension_numbers<[1], [0], [0], [1], [0, 0, 1, 1], [], []>} : vector<8x32xf32>, vector<32x128xf32>, vector<8x128xf32> -> vector<8x128xf32>
    %c0_43 = arith.constant 0 : index
    %c0_44 = arith.constant 0 : index
    %c0_45 = arith.constant 0 : index
    %132 = vector.load %arg9[%c0_43, %c0_44, %c0_45] : memref<2x1x128xf32, #tpu.memory_space<vmem>>, vector<1x1x128xf32>
    %133 = vector.shape_cast %132 : vector<1x1x128xf32> to vector<1x128xf32>
    %134 = vector.broadcast %133 : vector<1x128xf32> to vector<8x128xf32>
    %135 = arith.addf %131, %134 : vector<8x128xf32>
    %cst_46 = arith.constant 5.000000e-01 : f32
    %136 = vector.broadcast %cst_46 : f32 to vector<8x128xf32>
    %137 = arith.mulf %136, %135 : vector<8x128xf32>
    %cst_47 = arith.constant 4.471500e-02 : f32
    %138 = vector.broadcast %cst_47 : f32 to vector<8x128xf32>
    %139 = arith.mulf %138, %135 : vector<8x128xf32>
    %140 = arith.mulf %139, %135 : vector<8x128xf32>
    %141 = arith.mulf %140, %135 : vector<8x128xf32>
    %142 = arith.addf %135, %141 : vector<8x128xf32>
    %cst_48 = arith.constant 0.797884583 : f32
    %143 = vector.broadcast %cst_48 : f32 to vector<8x128xf32>
    %144 = arith.mulf %143, %142 : vector<8x128xf32>
    %145 = math.tanh %144 : vector<8x128xf32>
    %cst_49 = arith.constant 1.000000e+00 : f32
    %146 = vector.broadcast %cst_49 : f32 to vector<8x128xf32>
    %147 = arith.addf %146, %145 : vector<8x128xf32>
    %148 = arith.mulf %137, %147 : vector<8x128xf32>
    %c0_50 = arith.constant 0 : index
    %c0_51 = arith.constant 0 : index
    %c0_52 = arith.constant 0 : index
    %149 = vector.load %arg10[%c0_50, %c0_51, %c0_52] : memref<2x128x32xf32, #tpu.memory_space<vmem>>, vector<1x128x32xf32>
    %150 = vector.shape_cast %149 : vector<1x128x32xf32> to vector<128x32xf32>
    %cst_53 = arith.constant dense<0.000000e+00> : vector<8x32xf32>
    %151 = tpu.matmul %148, %150, %cst_53 {dimension_numbers = #tpu.dot_dimension_numbers<[1], [0], [0], [1], [0, 0, 1, 1], [], []>} : vector<8x128xf32>, vector<128x32xf32>, vector<8x32xf32> -> vector<8x32xf32>
    %c6 = arith.constant 6 : index
    %c0_54 = arith.constant 0 : index
    %152 = vector.load %arg4[%c6, %c0_54] : memref<15x32xf32, #tpu.memory_space<vmem>>, vector<1x32xf32>
    %153 = vector.broadcast %152 : vector<1x32xf32> to vector<8x32xf32>
    %154 = arith.addf %151, %153 : vector<8x32xf32>
    %155 = arith.addf %128, %154 : vector<8x32xf32>
    %c7 = arith.constant 7 : index
    %c0_55 = arith.constant 0 : index
    %156 = vector.load %arg4[%c7, %c0_55] : memref<15x32xf32, #tpu.memory_space<vmem>>, vector<1x32xf32>
    %c8 = arith.constant 8 : index
    %c0_56 = arith.constant 0 : index
    %157 = vector.load %arg4[%c8, %c0_56] : memref<15x32xf32, #tpu.memory_space<vmem>>, vector<1x32xf32>
    %cst_57 = arith.constant dense<0.000000e+00> : vector<8xf32>
    %158 = vector.multi_reduction <add>, %155, %cst_57 [1] : vector<8x32xf32> to vector<8xf32>
    %159 = vector.shape_cast %158 : vector<8xf32> to vector<8x1xf32>
    %cst_58 = arith.constant 3.200000e+01 : f32
    %160 = vector.broadcast %cst_58 : f32 to vector<8x1xf32>
    %161 = arith.divf %159, %160 : vector<8x1xf32>
    %162 = vector.broadcast %161 : vector<8x1xf32> to vector<8x32xf32>
    %163 = arith.subf %155, %162 : vector<8x32xf32>
    %164 = arith.mulf %163, %163 : vector<8x32xf32>
    %cst_59 = arith.constant dense<0.000000e+00> : vector<8xf32>
    %165 = vector.multi_reduction <add>, %164, %cst_59 [1] : vector<8x32xf32> to vector<8xf32>
    %166 = vector.shape_cast %165 : vector<8xf32> to vector<8x1xf32>
    %cst_60 = arith.constant 3.200000e+01 : f32
    %167 = vector.broadcast %cst_60 : f32 to vector<8x1xf32>
    %168 = arith.divf %166, %167 : vector<8x1xf32>
    %cst_61 = arith.constant 9.99999996E-13 : f32
    %169 = vector.broadcast %cst_61 : f32 to vector<8x1xf32>
    %170 = arith.addf %168, %169 : vector<8x1xf32>
    %171 = math.rsqrt %170 : vector<8x1xf32>
    %172 = vector.broadcast %171 : vector<8x1xf32> to vector<8x32xf32>
    %173 = arith.mulf %163, %172 : vector<8x32xf32>
    %174 = vector.broadcast %156 : vector<1x32xf32> to vector<8x32xf32>
    %175 = arith.mulf %173, %174 : vector<8x32xf32>
    %176 = vector.broadcast %157 : vector<1x32xf32> to vector<8x32xf32>
    %177 = arith.addf %175, %176 : vector<8x32xf32>
    %c1_62 = arith.constant 1 : index
    %c0_63 = arith.constant 0 : index
    %c0_64 = arith.constant 0 : index
    %178 = vector.load %arg5[%c1_62, %c0_63, %c0_64] : memref<2x32x96xf32, #tpu.memory_space<vmem>>, vector<1x32x96xf32>
    %179 = vector.shape_cast %178 : vector<1x32x96xf32> to vector<32x96xf32>
    %cst_65 = arith.constant dense<0.000000e+00> : vector<8x96xf32>
    %180 = tpu.matmul %177, %179, %cst_65 {dimension_numbers = #tpu.dot_dimension_numbers<[1], [0], [0], [1], [0, 0, 1, 1], [], []>} : vector<8x32xf32>, vector<32x96xf32>, vector<8x96xf32> -> vector<8x96xf32>
    %c1_66 = arith.constant 1 : index
    %c0_67 = arith.constant 0 : index
    %c0_68 = arith.constant 0 : index
    %181 = vector.load %arg6[%c1_66, %c0_67, %c0_68] : memref<2x1x96xf32, #tpu.memory_space<vmem>>, vector<1x1x96xf32>
    %182 = vector.shape_cast %181 : vector<1x1x96xf32> to vector<1x96xf32>
    %183 = vector.broadcast %182 : vector<1x96xf32> to vector<8x96xf32>
    %184 = arith.addf %180, %183 : vector<8x96xf32>
    %185 = vector.extract_strided_slice %184 {offsets = [0, 0], sizes = [8, 8], strides = [1, 1]} : vector<8x96xf32> to vector<8x8xf32>
    %186 = vector.extract_strided_slice %184 {offsets = [0, 8], sizes = [8, 8], strides = [1, 1]} : vector<8x96xf32> to vector<8x8xf32>
    %187 = vector.extract_strided_slice %184 {offsets = [0, 16], sizes = [8, 8], strides = [1, 1]} : vector<8x96xf32> to vector<8x8xf32>
    %188 = vector.extract_strided_slice %184 {offsets = [0, 24], sizes = [8, 8], strides = [1, 1]} : vector<8x96xf32> to vector<8x8xf32>
    %189 = vector.shape_cast %185 : vector<8x8xf32> to vector<1x8x8xf32>
    %190 = vector.shape_cast %186 : vector<8x8xf32> to vector<1x8x8xf32>
    %191 = vector.shape_cast %187 : vector<8x8xf32> to vector<1x8x8xf32>
    %192 = vector.shape_cast %188 : vector<8x8xf32> to vector<1x8x8xf32>
    %193 = tpu.concatenate %189, %190, %191, %192 in 0 : vector<1x8x8xf32>, vector<1x8x8xf32>, vector<1x8x8xf32>, vector<1x8x8xf32> -> vector<4x8x8xf32>
    %194 = vector.extract_strided_slice %184 {offsets = [0, 32], sizes = [8, 8], strides = [1, 1]} : vector<8x96xf32> to vector<8x8xf32>
    %195 = vector.extract_strided_slice %184 {offsets = [0, 40], sizes = [8, 8], strides = [1, 1]} : vector<8x96xf32> to vector<8x8xf32>
    %196 = vector.extract_strided_slice %184 {offsets = [0, 48], sizes = [8, 8], strides = [1, 1]} : vector<8x96xf32> to vector<8x8xf32>
    %197 = vector.extract_strided_slice %184 {offsets = [0, 56], sizes = [8, 8], strides = [1, 1]} : vector<8x96xf32> to vector<8x8xf32>
    %198 = vector.shape_cast %194 : vector<8x8xf32> to vector<1x8x8xf32>
    %199 = vector.shape_cast %195 : vector<8x8xf32> to vector<1x8x8xf32>
    %200 = vector.shape_cast %196 : vector<8x8xf32> to vector<1x8x8xf32>
    %201 = vector.shape_cast %197 : vector<8x8xf32> to vector<1x8x8xf32>
    %202 = tpu.concatenate %198, %199, %200, %201 in 0 : vector<1x8x8xf32>, vector<1x8x8xf32>, vector<1x8x8xf32>, vector<1x8x8xf32> -> vector<4x8x8xf32>
    %203 = vector.extract_strided_slice %184 {offsets = [0, 64], sizes = [8, 8], strides = [1, 1]} : vector<8x96xf32> to vector<8x8xf32>
    %204 = vector.extract_strided_slice %184 {offsets = [0, 72], sizes = [8, 8], strides = [1, 1]} : vector<8x96xf32> to vector<8x8xf32>
    %205 = vector.extract_strided_slice %184 {offsets = [0, 80], sizes = [8, 8], strides = [1, 1]} : vector<8x96xf32> to vector<8x8xf32>
    %206 = vector.extract_strided_slice %184 {offsets = [0, 88], sizes = [8, 8], strides = [1, 1]} : vector<8x96xf32> to vector<8x8xf32>
    %207 = vector.shape_cast %203 : vector<8x8xf32> to vector<1x8x8xf32>
    %208 = vector.shape_cast %204 : vector<8x8xf32> to vector<1x8x8xf32>
    %209 = vector.shape_cast %205 : vector<8x8xf32> to vector<1x8x8xf32>
    %210 = vector.shape_cast %206 : vector<8x8xf32> to vector<1x8x8xf32>
    %211 = tpu.concatenate %207, %208, %209, %210 in 0 : vector<1x8x8xf32>, vector<1x8x8xf32>, vector<1x8x8xf32>, vector<1x8x8xf32> -> vector<4x8x8xf32>
    "tpu.trace_start"() <{level = 10 : i32, message = "nqd,nkd->nqk"}> : () -> ()
    %cst_69 = arith.constant dense<0.000000e+00> : vector<4x8x8xf32>
    %212 = tpu.matmul %193, %202, %cst_69 {dimension_numbers = #tpu.dot_dimension_numbers<[2], [2], [1], [1], [0, 0, 0, 1, 1, 1], [0], [0]>} : vector<4x8x8xf32>, vector<4x8x8xf32>, vector<4x8x8xf32> -> vector<4x8x8xf32>
    "tpu.trace_stop"() : () -> ()
    %213 = arith.addf %212, %43 : vector<4x8x8xf32>
    %cst_70 = arith.constant dense<0xFF800000> : vector<4x8xf32>
    %214 = vector.multi_reduction <maximumf>, %213, %cst_70 [2] : vector<4x8x8xf32> to vector<4x8xf32>
    %215 = vector.shape_cast %214 : vector<4x8xf32> to vector<4x8x1xf32>
    %216 = vector.broadcast %215 : vector<4x8x1xf32> to vector<4x8x8xf32>
    %217 = arith.subf %213, %216 : vector<4x8x8xf32>
    %218 = math.exp %217 : vector<4x8x8xf32>
    %cst_71 = arith.constant dense<0.000000e+00> : vector<4x8xf32>
    %219 = vector.multi_reduction <add>, %218, %cst_71 [2] : vector<4x8x8xf32> to vector<4x8xf32>
    %220 = vector.shape_cast %219 : vector<4x8xf32> to vector<4x8x1xf32>
    %221 = tpu.reciprocal %220 {approx = true} : vector<4x8x1xf32> -> vector<4x8x1xf32>
    %222 = vector.broadcast %221 : vector<4x8x1xf32> to vector<4x8x8xf32>
    %223 = arith.mulf %218, %222 : vector<4x8x8xf32>
    "tpu.trace_start"() <{level = 10 : i32, message = "nqk,nkd->nqd"}> : () -> ()
    %cst_72 = arith.constant dense<0.000000e+00> : vector<4x8x8xf32>
    %224 = tpu.matmul %223, %211, %cst_72 {dimension_numbers = #tpu.dot_dimension_numbers<[2], [1], [1], [2], [0, 0, 0, 1, 1, 2], [0], [0]>} : vector<4x8x8xf32>, vector<4x8x8xf32>, vector<4x8x8xf32> -> vector<4x8x8xf32>
    "tpu.trace_stop"() : () -> ()
    %225 = vector.extract_strided_slice %224 {offsets = [0, 0, 0], sizes = [1, 8, 8], strides = [1, 1, 1]} : vector<4x8x8xf32> to vector<1x8x8xf32>
    %226 = vector.shape_cast %225 : vector<1x8x8xf32> to vector<8x8xf32>
    %227 = vector.extract_strided_slice %224 {offsets = [1, 0, 0], sizes = [1, 8, 8], strides = [1, 1, 1]} : vector<4x8x8xf32> to vector<1x8x8xf32>
    %228 = vector.shape_cast %227 : vector<1x8x8xf32> to vector<8x8xf32>
    %229 = vector.extract_strided_slice %224 {offsets = [2, 0, 0], sizes = [1, 8, 8], strides = [1, 1, 1]} : vector<4x8x8xf32> to vector<1x8x8xf32>
    %230 = vector.shape_cast %229 : vector<1x8x8xf32> to vector<8x8xf32>
    %231 = vector.extract_strided_slice %224 {offsets = [3, 0, 0], sizes = [1, 8, 8], strides = [1, 1, 1]} : vector<4x8x8xf32> to vector<1x8x8xf32>
    %232 = vector.shape_cast %231 : vector<1x8x8xf32> to vector<8x8xf32>
    %233 = tpu.concatenate %226, %228, %230, %232 in 1 : vector<8x8xf32>, vector<8x8xf32>, vector<8x8xf32>, vector<8x8xf32> -> vector<8x32xf32>
    %c1_73 = arith.constant 1 : index
    %c0_74 = arith.constant 0 : index
    %c0_75 = arith.constant 0 : index
    %234 = vector.load %arg7[%c1_73, %c0_74, %c0_75] : memref<2x32x32xf32, #tpu.memory_space<vmem>>, vector<1x32x32xf32>
    %235 = vector.shape_cast %234 : vector<1x32x32xf32> to vector<32x32xf32>
    %cst_76 = arith.constant dense<0.000000e+00> : vector<8x32xf32>
    %236 = tpu.matmul %233, %235, %cst_76 {dimension_numbers = #tpu.dot_dimension_numbers<[1], [0], [0], [1], [0, 0, 1, 1], [], []>} : vector<8x32xf32>, vector<32x32xf32>, vector<8x32xf32> -> vector<8x32xf32>
    %c9 = arith.constant 9 : index
    %c0_77 = arith.constant 0 : index
    %237 = vector.load %arg4[%c9, %c0_77] : memref<15x32xf32, #tpu.memory_space<vmem>>, vector<1x32xf32>
    %238 = vector.broadcast %237 : vector<1x32xf32> to vector<8x32xf32>
    %239 = arith.addf %236, %238 : vector<8x32xf32>
    %240 = arith.addf %177, %239 : vector<8x32xf32>
    %c10 = arith.constant 10 : index
    %c0_78 = arith.constant 0 : index
    %241 = vector.load %arg4[%c10, %c0_78] : memref<15x32xf32, #tpu.memory_space<vmem>>, vector<1x32xf32>
    %c11 = arith.constant 11 : index
    %c0_79 = arith.constant 0 : index
    %242 = vector.load %arg4[%c11, %c0_79] : memref<15x32xf32, #tpu.memory_space<vmem>>, vector<1x32xf32>
    %cst_80 = arith.constant dense<0.000000e+00> : vector<8xf32>
    %243 = vector.multi_reduction <add>, %240, %cst_80 [1] : vector<8x32xf32> to vector<8xf32>
    %244 = vector.shape_cast %243 : vector<8xf32> to vector<8x1xf32>
    %cst_81 = arith.constant 3.200000e+01 : f32
    %245 = vector.broadcast %cst_81 : f32 to vector<8x1xf32>
    %246 = arith.divf %244, %245 : vector<8x1xf32>
    %247 = vector.broadcast %246 : vector<8x1xf32> to vector<8x32xf32>
    %248 = arith.subf %240, %247 : vector<8x32xf32>
    %249 = arith.mulf %248, %248 : vector<8x32xf32>
    %cst_82 = arith.constant dense<0.000000e+00> : vector<8xf32>
    %250 = vector.multi_reduction <add>, %249, %cst_82 [1] : vector<8x32xf32> to vector<8xf32>
    %251 = vector.shape_cast %250 : vector<8xf32> to vector<8x1xf32>
    %cst_83 = arith.constant 3.200000e+01 : f32
    %252 = vector.broadcast %cst_83 : f32 to vector<8x1xf32>
    %253 = arith.divf %251, %252 : vector<8x1xf32>
    %cst_84 = arith.constant 9.99999996E-13 : f32
    %254 = vector.broadcast %cst_84 : f32 to vector<8x1xf32>
    %255 = arith.addf %253, %254 : vector<8x1xf32>
    %256 = math.rsqrt %255 : vector<8x1xf32>
    %257 = vector.broadcast %256 : vector<8x1xf32> to vector<8x32xf32>
    %258 = arith.mulf %248, %257 : vector<8x32xf32>
    %259 = vector.broadcast %241 : vector<1x32xf32> to vector<8x32xf32>
    %260 = arith.mulf %258, %259 : vector<8x32xf32>
    %261 = vector.broadcast %242 : vector<1x32xf32> to vector<8x32xf32>
    %262 = arith.addf %260, %261 : vector<8x32xf32>
    %c1_85 = arith.constant 1 : index
    %c0_86 = arith.constant 0 : index
    %c0_87 = arith.constant 0 : index
    %263 = vector.load %arg8[%c1_85, %c0_86, %c0_87] : memref<2x32x128xf32, #tpu.memory_space<vmem>>, vector<1x32x128xf32>
    %264 = vector.shape_cast %263 : vector<1x32x128xf32> to vector<32x128xf32>
    %cst_88 = arith.constant dense<0.000000e+00> : vector<8x128xf32>
    %265 = tpu.matmul %262, %264, %cst_88 {dimension_numbers = #tpu.dot_dimension_numbers<[1], [0], [0], [1], [0, 0, 1, 1], [], []>} : vector<8x32xf32>, vector<32x128xf32>, vector<8x128xf32> -> vector<8x128xf32>
    %c1_89 = arith.constant 1 : index
    %c0_90 = arith.constant 0 : index
    %c0_91 = arith.constant 0 : index
    %266 = vector.load %arg9[%c1_89, %c0_90, %c0_91] : memref<2x1x128xf32, #tpu.memory_space<vmem>>, vector<1x1x128xf32>
    %267 = vector.shape_cast %266 : vector<1x1x128xf32> to vector<1x128xf32>
    %268 = vector.broadcast %267 : vector<1x128xf32> to vector<8x128xf32>
    %269 = arith.addf %265, %268 : vector<8x128xf32>
    %cst_92 = arith.constant 5.000000e-01 : f32
    %270 = vector.broadcast %cst_92 : f32 to vector<8x128xf32>
    %271 = arith.mulf %270, %269 : vector<8x128xf32>
    %cst_93 = arith.constant 4.471500e-02 : f32
    %272 = vector.broadcast %cst_93 : f32 to vector<8x128xf32>
    %273 = arith.mulf %272, %269 : vector<8x128xf32>
    %274 = arith.mulf %273, %269 : vector<8x128xf32>
    %275 = arith.mulf %274, %269 : vector<8x128xf32>
    %276 = arith.addf %269, %275 : vector<8x128xf32>
    %cst_94 = arith.constant 0.797884583 : f32
    %277 = vector.broadcast %cst_94 : f32 to vector<8x128xf32>
    %278 = arith.mulf %277, %276 : vector<8x128xf32>
    %279 = math.tanh %278 : vector<8x128xf32>
    %cst_95 = arith.constant 1.000000e+00 : f32
    %280 = vector.broadcast %cst_95 : f32 to vector<8x128xf32>
    %281 = arith.addf %280, %279 : vector<8x128xf32>
    %282 = arith.mulf %271, %281 : vector<8x128xf32>
    %c1_96 = arith.constant 1 : index
    %c0_97 = arith.constant 0 : index
    %c0_98 = arith.constant 0 : index
    %283 = vector.load %arg10[%c1_96, %c0_97, %c0_98] : memref<2x128x32xf32, #tpu.memory_space<vmem>>, vector<1x128x32xf32>
    %284 = vector.shape_cast %283 : vector<1x128x32xf32> to vector<128x32xf32>
    %cst_99 = arith.constant dense<0.000000e+00> : vector<8x32xf32>
    %285 = tpu.matmul %282, %284, %cst_99 {dimension_numbers = #tpu.dot_dimension_numbers<[1], [0], [0], [1], [0, 0, 1, 1], [], []>} : vector<8x128xf32>, vector<128x32xf32>, vector<8x32xf32> -> vector<8x32xf32>
    %c12 = arith.constant 12 : index
    %c0_100 = arith.constant 0 : index
    %286 = vector.load %arg4[%c12, %c0_100] : memref<15x32xf32, #tpu.memory_space<vmem>>, vector<1x32xf32>
    %287 = vector.broadcast %286 : vector<1x32xf32> to vector<8x32xf32>
    %288 = arith.addf %285, %287 : vector<8x32xf32>
    %289 = arith.addf %262, %288 : vector<8x32xf32>
    %c13 = arith.constant 13 : index
    %c0_101 = arith.constant 0 : index
    %290 = vector.load %arg4[%c13, %c0_101] : memref<15x32xf32, #tpu.memory_space<vmem>>, vector<1x32xf32>
    %c14 = arith.constant 14 : index
    %c0_102 = arith.constant 0 : index
    %291 = vector.load %arg4[%c14, %c0_102] : memref<15x32xf32, #tpu.memory_space<vmem>>, vector<1x32xf32>
    %cst_103 = arith.constant dense<0.000000e+00> : vector<8xf32>
    %292 = vector.multi_reduction <add>, %289, %cst_103 [1] : vector<8x32xf32> to vector<8xf32>
    %293 = vector.shape_cast %292 : vector<8xf32> to vector<8x1xf32>
    %cst_104 = arith.constant 3.200000e+01 : f32
    %294 = vector.broadcast %cst_104 : f32 to vector<8x1xf32>
    %295 = arith.divf %293, %294 : vector<8x1xf32>
    %296 = vector.broadcast %295 : vector<8x1xf32> to vector<8x32xf32>
    %297 = arith.subf %289, %296 : vector<8x32xf32>
    %298 = arith.mulf %297, %297 : vector<8x32xf32>
    %cst_105 = arith.constant dense<0.000000e+00> : vector<8xf32>
    %299 = vector.multi_reduction <add>, %298, %cst_105 [1] : vector<8x32xf32> to vector<8xf32>
    %300 = vector.shape_cast %299 : vector<8xf32> to vector<8x1xf32>
    %cst_106 = arith.constant 3.200000e+01 : f32
    %301 = vector.broadcast %cst_106 : f32 to vector<8x1xf32>
    %302 = arith.divf %300, %301 : vector<8x1xf32>
    %cst_107 = arith.constant 9.99999996E-13 : f32
    %303 = vector.broadcast %cst_107 : f32 to vector<8x1xf32>
    %304 = arith.addf %302, %303 : vector<8x1xf32>
    %305 = math.rsqrt %304 : vector<8x1xf32>
    %306 = vector.broadcast %305 : vector<8x1xf32> to vector<8x32xf32>
    %307 = arith.mulf %297, %306 : vector<8x32xf32>
    %308 = vector.broadcast %290 : vector<1x32xf32> to vector<8x32xf32>
    %309 = arith.mulf %307, %308 : vector<8x32xf32>
    %310 = vector.broadcast %291 : vector<1x32xf32> to vector<8x32xf32>
    %311 = arith.addf %309, %310 : vector<8x32xf32>
    %c0_108 = arith.constant 0 : index
    %c0_109 = arith.constant 0 : index
    %312 = vector.load %arg11[%c0_108, %c0_109] : memref<32x128xf32, #tpu.memory_space<vmem>>, vector<32x128xf32>
    %cst_110 = arith.constant dense<0.000000e+00> : vector<8x128xf32>
    %313 = tpu.matmul %311, %312, %cst_110 {dimension_numbers = #tpu.dot_dimension_numbers<[1], [0], [0], [1], [0, 0, 1, 1], [], []>} : vector<8x32xf32>, vector<32x128xf32>, vector<8x128xf32> -> vector<8x128xf32>
    %c0_111 = arith.constant 0 : index
    %c0_112 = arith.constant 0 : index
    %314 = vector.load %arg12[%c0_111, %c0_112] : memref<1x128xf32, #tpu.memory_space<vmem>>, vector<1x128xf32>
    %315 = vector.broadcast %314 : vector<1x128xf32> to vector<8x128xf32>
    %316 = arith.addf %313, %315 : vector<8x128xf32>
    %cst_113 = arith.constant dense<0xFF800000> : vector<8xf32>
    %317 = vector.multi_reduction <maximumf>, %316, %cst_113 [1] : vector<8x128xf32> to vector<8xf32>
    %318 = vector.shape_cast %317 : vector<8xf32> to vector<8x1xf32>
    %319 = vector.broadcast %318 : vector<8x1xf32> to vector<8x128xf32>
    %320 = arith.subf %316, %319 : vector<8x128xf32>
    %321 = math.exp %320 : vector<8x128xf32>
    %cst_114 = arith.constant dense<0.000000e+00> : vector<8xf32>
    %322 = vector.multi_reduction <add>, %321, %cst_114 [1] : vector<8x128xf32> to vector<8xf32>
    %323 = vector.shape_cast %322 : vector<8xf32> to vector<8x1xf32>
    %324 = vector.broadcast %323 : vector<8x1xf32> to vector<8x128xf32>
    %325 = arith.divf %321, %324 : vector<8x128xf32>
    %c0_115 = arith.constant 0 : index
    %c0_116 = arith.constant 0 : index
    %326 = vector.load %arg13[%c0_115, %c0_116] : memref<8x128xf32, #tpu.memory_space<vmem>>, vector<8x128xf32>
    tpu.vector_store %arg13[%c0_115, %c0_116], %325 {strides = array<i32>} : memref<8x128xf32, #tpu.memory_space<vmem>>, vector<8x128xf32>,
    return
  }
  func.func @transform_0(%arg0: i32) -> (i32, i32) {
    %c0_i32 = arith.constant 0 : i32
    %c0_i32_0 = arith.constant 0 : i32
    return %arg0, %c0_i32 : i32, i32
  }
  func.func @transform_1(%arg0: i32) -> (i32, i32) {
    %c0_i32 = arith.constant 0 : i32
    %c0_i32_0 = arith.constant 0 : i32
    %c0_i32_1 = arith.constant 0 : i32
    return %c0_i32, %c0_i32_0 : i32, i32
  }
  func.func @transform_2(%arg0: i32) -> (i32, i32) {
    %c0_i32 = arith.constant 0 : i32
    %c0_i32_0 = arith.constant 0 : i32
    %c0_i32_1 = arith.constant 0 : i32
    return %c0_i32, %c0_i32_0 : i32, i32
  }
  func.func @transform_3(%arg0: i32) -> (i32, i32) {
    %c0_i32 = arith.constant 0 : i32
    %c0_i32_0 = arith.constant 0 : i32
    %c0_i32_1 = arith.constant 0 : i32
    return %c0_i32, %c0_i32_0 : i32, i32
  }
  func.func @transform_4(%arg0: i32) -> (i32, i32, i32) {
    %c0_i32 = arith.constant 0 : i32
    %c0_i32_0 = arith.constant 0 : i32
    %c0_i32_1 = arith.constant 0 : i32
    %c0_i32_2 = arith.constant 0 : i32
    return %c0_i32, %c0_i32_0, %c0_i32_1 : i32, i32, i32
  }
  func.func @transform_5(%arg0: i32) -> (i32, i32, i32) {
    %c0_i32 = arith.constant 0 : i32
    %c0_i32_0 = arith.constant 0 : i32
    %c0_i32_1 = arith.constant 0 : i32
    %c0_i32_2 = arith.constant 0 : i32
    return %c0_i32, %c0_i32_0, %c0_i32_1 : i32, i32, i32
  }
  func.func @transform_6(%arg0: i32) -> (i32, i32, i32) {
    %c0_i32 = arith.constant 0 : i32
    %c0_i32_0 = arith.constant 0 : i32
    %c0_i32_1 = arith.constant 0 : i32
    %c0_i32_2 = arith.constant 0 : i32
    return %c0_i32, %c0_i32_0, %c0_i32_1 : i32, i32, i32
  }
  func.func @transform_7(%arg0: i32) -> (i32, i32, i32) {
    %c0_i32 = arith.constant 0 : i32
    %c0_i32_0 = arith.constant 0 : i32
    %c0_i32_1 = arith.constant 0 : i32
    %c0_i32_2 = arith.constant 0 : i32
    return %c0_i32, %c0_i32_0, %c0_i32_1 : i32, i32, i32
  }
  func.func @transform_8(%arg0: i32) -> (i32, i32, i32) {
    %c0_i32 = arith.constant 0 : i32
    %c0_i32_0 = arith.constant 0 : i32
    %c0_i32_1 = arith.constant 0 : i32
    %c0_i32_2 = arith.constant 0 : i32
    return %c0_i32, %c0_i32_0, %c0_i32_1 : i32, i32, i32
  }
  func.func @transform_9(%arg0: i32) -> (i32, i32, i32) {
    %c0_i32 = arith.constant 0 : i32
    %c0_i32_0 = arith.constant 0 : i32
    %c0_i32_1 = arith.constant 0 : i32
    %c0_i32_2 = arith.constant 0 : i32
    return %c0_i32, %c0_i32_0, %c0_i32_1 : i32, i32, i32
  }
  func.func @transform_10(%arg0: i32) -> (i32, i32) {
    %c0_i32 = arith.constant 0 : i32
    %c0_i32_0 = arith.constant 0 : i32
    %c0_i32_1 = arith.constant 0 : i32
    return %c0_i32, %c0_i32_0 : i32, i32
  }
  func.func @transform_11(%arg0: i32) -> (i32, i32) {
    %c0_i32 = arith.constant 0 : i32
    %c0_i32_0 = arith.constant 0 : i32
    %c0_i32_1 = arith.constant 0 : i32
    return %c0_i32, %c0_i32_0 : i32, i32
  }
  func.func @transform_12(%arg0: i32) -> (i32, i32) {
    %c0_i32 = arith.constant 0 : i32
    %c0_i32_0 = arith.constant 0 : i32
    return %arg0, %c0_i32 : i32, i32
  }
}

</mosaic_0001>

<llo_original>
// kernel: bert_lm_forward.1
$region0: #{bert_lm_forward.1}
  #allocation0 [shape = 'u32[]', space=smem, size = 0x4, offset = 0x4, fixed_abs, tag = 'smem constant byte address 0x4 - core index']
  #allocation1 [shape = 'u32[72,128]{1,0:T(1,128)}', space=vmem, size = 0x9000, scoped, tag = 'internal scratch']
  %s0 = inlined_call_operand.vmem [shape: s32[16,1], index: 0, kind: input, shape index: {}]
  %s1 = inlined_call_operand.vmem [shape: f32[64,32], index: 1, kind: input, shape index: {}]
  %s2 = inlined_call_operand.vmem [shape: f32[16,32], index: 2, kind: input, shape index: {}]
  %s3 = inlined_call_operand.vmem [shape: f32[15,32], index: 3, kind: input, shape index: {}]
  %s4 = inlined_call_operand.vmem [shape: f32[2,32,96], index: 4, kind: input, shape index: {}]
  %s5 = inlined_call_operand.vmem [shape: f32[2,1,96], index: 5, kind: input, shape index: {}]
  %s6 = inlined_call_operand.vmem [shape: f32[2,32,32], index: 6, kind: input, shape index: {}]
  %s7 = inlined_call_operand.vmem [shape: f32[2,32,128], index: 7, kind: input, shape index: {}]
  %s8 = inlined_call_operand.vmem [shape: f32[2,1,128], index: 8, kind: input, shape index: {}]
  %s9 = inlined_call_operand.vmem [shape: f32[2,128,32], index: 9, kind: input, shape index: {}]
  %s10 = inlined_call_operand.vmem [shape: f32[32,128], index: 10, kind: input, shape index: {}]
  %s11 = inlined_call_operand.vmem [shape: f32[1,128], index: 11, kind: input, shape index: {}]
  %s12 = inlined_call_operand.hbm [shape: f32[16,128], index: 12, kind: output, shape index: {}]
  %s13 = sld [smem:[#allocation0]]
  $region81: #{bert_lm_forward.1} parent=0
    _
  %s15 = ssub.s32 1, %s13
  %s16 = scalar_select 0, %s15, %s13
  $region1: #{bert_lm_forward.1} parent=0
    #allocation2 [shape = 'u8[8192]{0}', space=vmem, size = 0x2000, scoped, tag = 'output window, operand 0']
    #allocation3 [shape = 's32[2]{0}', space=sflag, size = 0x8, scoped, tag = 'scoped memory for bert_lm_forward.1']
    %17 = vsyncpa [#allocation3], 0
    %s18 = scalar_lea.sflag [#allocation3], 1
    %19 = vsyncpa %s18, 0
    loop: start=0, step=1, limit=4
    $region2: #{bert_lm_forward.1} parent=1 // loop_pre_header
      _
    $region3: #{bert_lm_forward.1} parent=1 // loop_header
      %s21 = sphi 0, %s25
      %p22 = scmp.ge.s32.totalorder %s21, 4
      %s31 = sphi 0, %s33
      %s34 = sphi 0, %s31
      %s35 = sphi 0, %s34
      %s51 = sphi 0, %s35
      %s55 = sphi 0, %s55
      %s57 = sphi 0, %s55
      %s58 = sphi 0, %s57
      %s72 = sphi 0, %s58
      %s76 = sphi 0, %s76
      %s78 = sphi 0, %s76
      %s79 = sphi 0, %s78
      %s93 = sphi 0, %s79
      %s97 = sphi 0, %s97
      %s99 = sphi 0, %s97
      %s100 = sphi 0, %s99
      %s114 = sphi 0, %s100
      %s118 = sphi 0, %s118
      %s120 = sphi 0, %s118
      %s121 = sphi 0, %s120
      %s135 = sphi 0, %s121
      %s139 = sphi 0, %s139
      %s141 = sphi 0, %s139
      %s142 = sphi 0, %s141
      %s156 = sphi 0, %s142
      %s160 = sphi 0, %s160
      %s162 = sphi 0, %s160
      %s163 = sphi 0, %s162
      %s177 = sphi 0, %s163
      %s181 = sphi 0, %s181
      %s183 = sphi 0, %s181
      %s184 = sphi 0, %s183
      %s198 = sphi 0, %s184
      %s202 = sphi 0, %s202
      %s204 = sphi 0, %s202
      %s205 = sphi 0, %s204
      %s219 = sphi 0, %s205
      %s223 = sphi 0, %s223
      %s225 = sphi 0, %s223
      %s226 = sphi 0, %s225
      %s240 = sphi 0, %s226
      %s244 = sphi 0, %s244
      %s246 = sphi 0, %s244
      %s247 = sphi 0, %s246
      %s261 = sphi 0, %s247
      %s265 = sphi 0, %s265
      %s267 = sphi 0, %s265
      %s268 = sphi 0, %s267
      %s282 = sphi 0, %s268
      %s288 = sphi 0, %s290
      %s291 = sphi 0, %s288
      %s292 = sphi 0, %s291
      %s308 = sphi 0, %s292
    $region4: #{bert_lm_forward.1} parent=1 // loop_header_branch
      %24 = sbr.rel (%p22) target = $region8
    $region5: #{bert_lm_forward.1} parent=1 // loop_body
      %s26 = ssub.s32 %s21, 1
      %s27 = ssub.s32 %s21, 2
      %s28 = sadd.s32 %s21, 1
      %s29 = ssub.s32 %s21, %s28
      %p30 = scmp.eq.s32.totalorder %s29, 0
      %s32 = sadd.s32 %s31, 1
      %s33 = scalar_select %p30, %s31, %s32
      %p36 = pneg %p30
      %p37 = scmp.eq.s32.totalorder %s21, 1
      %p38 = por %p36, %p37
      %p39 = scmp.ne.s32.totalorder %s31, %s34
      %p40 = scmp.eq.s32.totalorder %s21, 0
      %p41 = por %p39, %p40
      %p42 = scmp.ne.s32.totalorder %s31, %s34
      %p43 = scmp.eq.s32.totalorder %s26, 1
      %p44 = por %p42, %p43
      %p45 = scmp.ne.s32.totalorder %s34, %s35
      %p46 = scmp.eq.s32.totalorder %s26, 0
      %p47 = por %p45, %p46
      %p48 = scmp.ne.s32.totalorder %s34, %s35
      %p49 = scmp.eq.s32.totalorder %s27, 1
      %p50 = por %p48, %p49
      %p52 = scmp.ne.s32.totalorder %s35, %s51
      %p53 = scmp.eq.s32.totalorder %s27, 0
      %p54 = por %p52, %p53
      %s56 = sadd.s32 %s55, 1
      %p59 = scmp.eq.s32.totalorder %s21, 1
      %p60 = scmp.ne.s32.totalorder %s55, %s57
      %p61 = scmp.eq.s32.totalorder %s21, 0
      %p62 = por %p60, %p61
      %p63 = scmp.ne.s32.totalorder %s55, %s57
      %p64 = scmp.eq.s32.totalorder %s26, 1
      %p65 = por %p63, %p64
      %p66 = scmp.ne.s32.totalorder %s57, %s58
      %p67 = scmp.eq.s32.totalorder %s26, 0
      %p68 = por %p66, %p67
      %p69 = scmp.ne.s32.totalorder %s57, %s58
      %p70 = scmp.eq.s32.totalorder %s27, 1
      %p71 = por %p69, %p70
      %p73 = scmp.ne.s32.totalorder %s58, %s72
      %p74 = scmp.eq.s32.totalorder %s27, 0
      %p75 = por %p73, %p74
      %s77 = sadd.s32 %s76, 1
      %p80 = scmp.eq.s32.totalorder %s21, 1
      %p81 = scmp.ne.s32.totalorder %s76, %s78
      %p82 = scmp.eq.s32.totalorder %s21, 0
      %p83 = por %p81, %p82
      %p84 = scmp.ne.s32.totalorder %s76, %s78
      %p85 = scmp.eq.s32.totalorder %s26, 1
      %p86 = por %p84, %p85
      %p87 = scmp.ne.s32.totalorder %s78, %s79
      %p88 = scmp.eq.s32.totalorder %s26, 0
      %p89 = por %p87, %p88
      %p90 = scmp.ne.s32.totalorder %s78, %s79
      %p91 = scmp.eq.s32.totalorder %s27, 1
      %p92 = por %p90, %p91
      %p94 = scmp.ne.s32.totalorder %s79, %s93
      %p95 = scmp.eq.s32.totalorder %s27, 0
      %p96 = por %p94, %p95
      %s98 = sadd.s32 %s97, 1
      %p101 = scmp.eq.s32.totalorder %s21, 1
      %p102 = scmp.ne.s32.totalorder %s97, %s99
      %p103 = scmp.eq.s32.totalorder %s21, 0
      %p104 = por %p102, %p103
      %p105 = scmp.ne.s32.totalorder %s97, %s99
      %p106 = scmp.eq.s32.totalorder %s26, 1
      %p107 = por %p105, %p106
      %p108 = scmp.ne.s32.totalorder %s99, %s100
      %p109 = scmp.eq.s32.totalorder %s26, 0
      %p110 = por %p108, %p109
      %p111 = scmp.ne.s32.totalorder %s99, %s100
      %p112 = scmp.eq.s32.totalorder %s27, 1
      %p113 = por %p111, %p112
      %p115 = scmp.ne.s32.totalorder %s100, %s114
      %p116 = scmp.eq.s32.totalorder %s27, 0
      %p117 = por %p115, %p116
      %s119 = sadd.s32 %s118, 1
      %p122 = scmp.eq.s32.totalorder %s21, 1
      %p123 = scmp.ne.s32.totalorder %s118, %s120
      %p124 = scmp.eq.s32.totalorder %s21, 0
      %p125 = por %p123, %p124
      %p126 = scmp.ne.s32.totalorder %s118, %s120
      %p127 = scmp.eq.s32.totalorder %s26, 1
      %p128 = por %p126, %p127
      %p129 = scmp.ne.s32.totalorder %s120, %s121
      %p130 = scmp.eq.s32.totalorder %s26, 0
      %p131 = por %p129, %p130
      %p132 = scmp.ne.s32.totalorder %s120, %s121
      %p133 = scmp.eq.s32.totalorder %s27, 1
      %p134 = por %p132, %p133
      %p136 = scmp.ne.s32.totalorder %s121, %s135
      %p137 = scmp.eq.s32.totalorder %s27, 0
      %p138 = por %p136, %p137
      %s140 = sadd.s32 %s139, 1
      %p143 = scmp.eq.s32.totalorder %s21, 1
      %p144 = scmp.ne.s32.totalorder %s139, %s141
      %p145 = scmp.eq.s32.totalorder %s21, 0
      %p146 = por %p144, %p145
      %p147 = scmp.ne.s32.totalorder %s139, %s141
      %p148 = scmp.eq.s32.totalorder %s26, 1
      %p149 = por %p147, %p148
      %p150 = scmp.ne.s32.totalorder %s141, %s142
      %p151 = scmp.eq.s32.totalorder %s26, 0
      %p152 = por %p150, %p151
      %p153 = scmp.ne.s32.totalorder %s141, %s142
      %p154 = scmp.eq.s32.totalorder %s27, 1
      %p155 = por %p153, %p154
      %p157 = scmp.ne.s32.totalorder %s142, %s156
      %p158 = scmp.eq.s32.totalorder %s27, 0
      %p159 = por %p157, %p158
      %s161 = sadd.s32 %s160, 1
      %p164 = scmp.eq.s32.totalorder %s21, 1
      %p165 = scmp.ne.s32.totalorder %s160, %s162
      %p166 = scmp.eq.s32.totalorder %s21, 0
      %p167 = por %p165, %p166
      %p168 = scmp.ne.s32.totalorder %s160, %s162
      %p169 = scmp.eq.s32.totalorder %s26, 1
      %p170 = por %p168, %p169
      %p171 = scmp.ne.s32.totalorder %s162, %s163
      %p172 = scmp.eq.s32.totalorder %s26, 0
      %p173 = por %p171, %p172
      %p174 = scmp.ne.s32.totalorder %s162, %s163
      %p175 = scmp.eq.s32.totalorder %s27, 1
      %p176 = por %p174, %p175
      %p178 = scmp.ne.s32.totalorder %s163, %s177
      %p179 = scmp.eq.s32.totalorder %s27, 0
      %p180 = por %p178, %p179
      %s182 = sadd.s32 %s181, 1
      %p185 = scmp.eq.s32.totalorder %s21, 1
      %p186 = scmp.ne.s32.totalorder %s181, %s183
      %p187 = scmp.eq.s32.totalorder %s21, 0
      %p188 = por %p186, %p187
      %p189 = scmp.ne.s32.totalorder %s181, %s183
      %p190 = scmp.eq.s32.totalorder %s26, 1
      %p191 = por %p189, %p190
      %p192 = scmp.ne.s32.totalorder %s183, %s184
      %p193 = scmp.eq.s32.totalorder %s26, 0
      %p194 = por %p192, %p193
      %p195 = scmp.ne.s32.totalorder %s183, %s184
      %p196 = scmp.eq.s32.totalorder %s27, 1
      %p197 = por %p195, %p196
      %p199 = scmp.ne.s32.totalorder %s184, %s198
      %p200 = scmp.eq.s32.totalorder %s27, 0
      %p201 = por %p199, %p200
      %s203 = sadd.s32 %s202, 1
      %p206 = scmp.eq.s32.totalorder %s21, 1
      %p207 = scmp.ne.s32.totalorder %s202, %s204
      %p208 = scmp.eq.s32.totalorder %s21, 0
      %p209 = por %p207, %p208
      %p210 = scmp.ne.s32.totalorder %s202, %s204
      %p211 = scmp.eq.s32.totalorder %s26, 1
      %p212 = por %p210, %p211
      %p213 = scmp.ne.s32.totalorder %s204, %s205
      %p214 = scmp.eq.s32.totalorder %s26, 0
      %p215 = por %p213, %p214
      %p216 = scmp.ne.s32.totalorder %s204, %s205
      %p217 = scmp.eq.s32.totalorder %s27, 1
      %p218 = por %p216, %p217
      %p220 = scmp.ne.s32.totalorder %s205, %s219
      %p221 = scmp.eq.s32.totalorder %s27, 0
      %p222 = por %p220, %p221
      %s224 = sadd.s32 %s223, 1
      %p227 = scmp.eq.s32.totalorder %s21, 1
      %p228 = scmp.ne.s32.totalorder %s223, %s225
      %p229 = scmp.eq.s32.totalorder %s21, 0
      %p230 = por %p228, %p229
      %p231 = scmp.ne.s32.totalorder %s223, %s225
      %p232 = scmp.eq.s32.totalorder %s26, 1
      %p233 = por %p231, %p232
      %p234 = scmp.ne.s32.totalorder %s225, %s226
      %p235 = scmp.eq.s32.totalorder %s26, 0
      %p236 = por %p234, %p235
      %p237 = scmp.ne.s32.totalorder %s225, %s226
      %p238 = scmp.eq.s32.totalorder %s27, 1
      %p239 = por %p237, %p238
      %p241 = scmp.ne.s32.totalorder %s226, %s240
      %p242 = scmp.eq.s32.totalorder %s27, 0
      %p243 = por %p241, %p242
      %s245 = sadd.s32 %s244, 1
      %p248 = scmp.eq.s32.totalorder %s21, 1
      %p249 = scmp.ne.s32.totalorder %s244, %s246
      %p250 = scmp.eq.s32.totalorder %s21, 0
      %p251 = por %p249, %p250
      %p252 = scmp.ne.s32.totalorder %s244, %s246
      %p253 = scmp.eq.s32.totalorder %s26, 1
      %p254 = por %p252, %p253
      %p255 = scmp.ne.s32.totalorder %s246, %s247
      %p256 = scmp.eq.s32.totalorder %s26, 0
      %p257 = por %p255, %p256
      %p258 = scmp.ne.s32.totalorder %s246, %s247
      %p259 = scmp.eq.s32.totalorder %s27, 1
      %p260 = por %p258, %p259
      %p262 = scmp.ne.s32.totalorder %s247, %s261
      %p263 = scmp.eq.s32.totalorder %s27, 0
      %p264 = por %p262, %p263
      %s266 = sadd.s32 %s265, 1
      %p269 = scmp.eq.s32.totalorder %s21, 1
      %p270 = scmp.ne.s32.totalorder %s265, %s267
      %p271 = scmp.eq.s32.totalorder %s21, 0
      %p272 = por %p270, %p271
      %p273 = scmp.ne.s32.totalorder %s265, %s267
      %p274 = scmp.eq.s32.totalorder %s26, 1
      %p275 = por %p273, %p274
      %p276 = scmp.ne.s32.totalorder %s267, %s268
      %p277 = scmp.eq.s32.totalorder %s26, 0
      %p278 = por %p276, %p277
      %p279 = scmp.ne.s32.totalorder %s267, %s268
      %p280 = scmp.eq.s32.totalorder %s27, 1
      %p281 = por %p279, %p280
      %p283 = scmp.ne.s32.totalorder %s268, %s282
      %p284 = scmp.eq.s32.totalorder %s27, 0
      %p285 = por %p283, %p284
      %s286 = ssub.s32 %s21, %s28
      %p287 = scmp.eq.s32.totalorder %s286, 0
      %s289 = sadd.s32 %s288, 1
      %s290 = scalar_select %p287, %s288, %s289
      %p293 = pneg %p287
      %p294 = scmp.eq.s32.totalorder %s21, 1
      %p295 = por %p293, %p294
      %p296 = scmp.ne.s32.totalorder %s288, %s291
      %p297 = scmp.eq.s32.totalorder %s21, 0
      %p298 = por %p296, %p297
      %p299 = scmp.ne.s32.totalorder %s288, %s291
      %p300 = scmp.eq.s32.totalorder %s26, 1
      %p301 = por %p299, %p300
      %p302 = scmp.ne.s32.totalorder %s291, %s292
      %p303 = scmp.eq.s32.totalorder %s26, 0
      %p304 = por %p302, %p303
      %p305 = scmp.ne.s32.totalorder %s291, %s292
      %p306 = scmp.eq.s32.totalorder %s27, 1
      %p307 = por %p305, %p306
      %p309 = scmp.ne.s32.totalorder %s292, %s308
      %p310 = scmp.eq.s32.totalorder %s27, 0
      %p311 = por %p309, %p310
      %p312 = scmp.le.s32.totalorder 1, %s21
      %p313 = scmp.lt.s32.totalorder %s21, 3
      %p314 = pnand %p312, %p313
      %p315 = pneg %p314
      // Predicated region
      $region9: #{bert_lm_forward.1} parent=5 // pred_check
        _
      $region10: #{bert_lm_forward.1} parent=5 // pred_check_branch
        %317 = sbr.rel (%p314) target = $region12
      $region11: #{bert_lm_forward.1} parent=5 // pred_region
        %s318 = ssub.s32 %s21, 1
        // Predicated region
        $region13: #{bert_lm_forward.1} parent=11 // pred_check
          %p319 = pneg %p68
        $region14: #{bert_lm_forward.1} parent=11 // pred_check_branch
          %321 = sbr.rel (%p319) target = $region16
        $region15: #{bert_lm_forward.1} parent=11 // pred_region
          _
        $region16: #{bert_lm_forward.1} parent=11 // pred_fallthru
          _
        // Predicated region
        $region17: #{bert_lm_forward.1} parent=11 // pred_check
          %p322 = pneg %p89
        $region18: #{bert_lm_forward.1} parent=11 // pred_check_branch
          %324 = sbr.rel (%p322) target = $region20
        $region19: #{bert_lm_forward.1} parent=11 // pred_region
          _
        $region20: #{bert_lm_forward.1} parent=11 // pred_fallthru
          _
        // Predicated region
        $region21: #{bert_lm_forward.1} parent=11 // pred_check
          %p325 = pneg %p110
        $region22: #{bert_lm_forward.1} parent=11 // pred_check_branch
          %327 = sbr.rel (%p325) target = $region24
        $region23: #{bert_lm_forward.1} parent=11 // pred_region
          _
        $region24: #{bert_lm_forward.1} parent=11 // pred_fallthru
          _
        // Predicated region
        $region25: #{bert_lm_forward.1} parent=11 // pred_check
          %p328 = pneg %p131
        $region26: #{bert_lm_forward.1} parent=11 // pred_check_branch
          %330 = sbr.rel (%p328) target = $region28
        $region27: #{bert_lm_forward.1} parent=11 // pred_region
          _
        $region28: #{bert_lm_forward.1} parent=11 // pred_fallthru
          _
        // Predicated region
        $region29: #{bert_lm_forward.1} parent=11 // pred_check
          %p331 = pneg %p152
        $region30: #{bert_lm_forward.1} parent=11 // pred_check_branch
          %333 = sbr.rel (%p331) target = $region32
        $region31: #{bert_lm_forward.1} parent=11 // pred_region
          _
        $region32: #{bert_lm_forward.1} parent=11 // pred_fallthru
          _
        // Predicated region
        $region33: #{bert_lm_forward.1} parent=11 // pred_check
          %p334 = pneg %p173
        $region34: #{bert_lm_forward.1} parent=11 // pred_check_branch
          %336 = sbr.rel (%p334) target = $region36
        $region35: #{bert_lm_forward.1} parent=11 // pred_region
          _
        $region36: #{bert_lm_forward.1} parent=11 // pred_fallthru
          _
        // Predicated region
        $region37: #{bert_lm_forward.1} parent=11 // pred_check
          %p337 = pneg %p194
        $region38: #{bert_lm_forward.1} parent=11 // pred_check_branch
          %339 = sbr.rel (%p337) target = $region40
        $region39: #{bert_lm_forward.1} parent=11 // pred_region
          _
        $region40: #{bert_lm_forward.1} parent=11 // pred_fallthru
          _
        // Predicated region
        $region41: #{bert_lm_forward.1} parent=11 // pred_check
          %p340 = pneg %p215
        $region42: #{bert_lm_forward.1} parent=11 // pred_check_branch
          %342 = sbr.rel (%p340) target = $region44
        $region43: #{bert_lm_forward.1} parent=11 // pred_region
          _
        $region44: #{bert_lm_forward.1} parent=11 // pred_fallthru
          _
        // Predicated region
        $region45: #{bert_lm_forward.1} parent=11 // pred_check
          %p343 = pneg %p236
        $region46: #{bert_lm_forward.1} parent=11 // pred_check_branch
          %345 = sbr.rel (%p343) target = $region48
        $region47: #{bert_lm_forward.1} parent=11 // pred_region
          _
        $region48: #{bert_lm_forward.1} parent=11 // pred_fallthru
          _
        // Predicated region
        $region49: #{bert_lm_forward.1} parent=11 // pred_check
          %p346 = pneg %p257
        $region50: #{bert_lm_forward.1} parent=11 // pred_check_branch
          %348 = sbr.rel (%p346) target = $region52
        $region51: #{bert_lm_forward.1} parent=11 // pred_region
          _
        $region52: #{bert_lm_forward.1} parent=11 // pred_fallthru
          _
        // Predicated region
        $region53: #{bert_lm_forward.1} parent=11 // pred_check
          %p349 = pneg %p278
        $region54: #{bert_lm_forward.1} parent=11 // pred_check_branch
          %351 = sbr.rel (%p349) target = $region56
        $region55: #{bert_lm_forward.1} parent=11 // pred_region
          _
        $region56: #{bert_lm_forward.1} parent=11 // pred_fallthru
          _
      $region12: #{bert_lm_forward.1} parent=5 // pred_fallthru
        _
      %p352 = scmp.lt.s32.totalorder %s21, 2
      // Predicated region
      $region57: #{bert_lm_forward.1} parent=5 // pred_check
        %p353 = pneg %p352
      $region58: #{bert_lm_forward.1} parent=5 // pred_check_branch
        %355 = sbr.rel (%p353) target = $region60
      $region59: #{bert_lm_forward.1} parent=5 // pred_region
        // Predicated region
        $region61: #{bert_lm_forward.1} parent=59 // pred_check
          %p356 = pneg %p41
        $region62: #{bert_lm_forward.1} parent=59 // pred_check_branch
          %358 = sbr.rel (%p356) target = $region64
        $region63: #{bert_lm_forward.1} parent=59 // pred_region
          %p359 = scmp.lt.s32.totalorder %s21, 1
          %s360 = scalar_select %p359, %s21, 1
          %s361 = smul.addr %s360, 8
          %s362 = scalar_lea.vmem %s0, %s361
        $region64: #{bert_lm_forward.1} parent=59 // pred_fallthru
          _
      $region60: #{bert_lm_forward.1} parent=5 // pred_fallthru
        _
      %p363 = scmp.le.s32.totalorder 1, %s21
      %p364 = scmp.lt.s32.totalorder %s21, 3
      %p365 = pnand %p363, %p364
      %p366 = pneg %p365
      // Predicated region
      $region65: #{bert_lm_forward.1} parent=5 // pred_check
        _
      $region66: #{bert_lm_forward.1} parent=5 // pred_check_branch
        %368 = sbr.rel (%p365) target = $region68
      $region67: #{bert_lm_forward.1} parent=5 // pred_region
        %s369 = ssub.s32 %s21, 1
        %p370 = scmp.lt.s32.totalorder %s26, 1
        %s371 = scalar_select %p370, %s26, 1
        %s372 = smul.addr %s371, 8
        %s373 = scalar_lea.vmem %s0, %s372
        %p374 = pneg %p47
        %p375 = pneg %p44
        %p376 = pneg %p68
        %p377 = pneg %p65
        %p378 = pneg %p89
        %p379 = pneg %p86
        %p380 = pneg %p110
        %p381 = pneg %p107
        %p382 = pneg %p131
        %p383 = pneg %p128
        %p384 = pneg %p152
        %p385 = pneg %p149
        %p386 = pneg %p173
        %p387 = pneg %p170
        %p388 = pneg %p194
        %p389 = pneg %p191
        %p390 = pneg %p215
        %p391 = pneg %p212
        %p392 = pneg %p236
        %p393 = pneg %p233
        %p394 = pneg %p257
        %p395 = pneg %p254
        %p396 = pneg %p278
        %p397 = pneg %p275
        %p398 = pneg %p304
        %p399 = pneg %p301
        %s400 = sand.u32 %s291, 1
        %s401 = scalar_lea.sflag [#allocation3], %s400
        %s402 = sand.u32 %s291, 1
        %s403 = smul.addr %s402, 8
        %s404 = scalar_lea.vmem [#allocation2], %s403
        %p405 = scmp.lt.s32.totalorder %s26, 1
        %s406 = scalar_select %p405, %s26, 1
        %s407 = smul.addr %s406, 8
        %s408 = scalar_lea.vmem %s0, %s407
        %v409 = vld [vmem:[%s408] sm:$0xff]
        %v410 = vlaneseq
        %v411 = vand.u32 %v410, 127
        %412 = vset.pattern.permute.xlu0 0
        %413 = vperm.xlu0 %412, %v409
        %v414 = vpop.permute.xlu0 %413
        %vm415 = vcmp.eq.s32.totalorder %v411, %v414
        %v416 = vsel %vm415, 1, 0
        %v417 = vcvt.s32.f32 %v416
        %v418 = vld [vmem:[%s1] sm:$0xff]
        %v419 = vld [vmem:[%s1 + $0x8] sm:$0xff]
        %v420 = vld [vmem:[%s1 + $0x10] sm:$0xff]
        %v421 = vld [vmem:[%s1 + $0x18] sm:$0xff]
        %v422 = vld [vmem:[%s1 + $0x20] sm:$0xff]
        %v423 = vld [vmem:[%s1 + $0x28] sm:$0xff]
        %v424 = vld [vmem:[%s1 + $0x30] sm:$0xff]
        %v425 = vld [vmem:[%s1 + $0x38] sm:$0xff]
        %v426 = vld [vmem:[%s2] sm:$0xff]
        %vm427 = vcmask 523264
        %v429 = vsel %vm427, %v417, 0
        %431 = vmatpush.msra.mxu0 0.0
        %432 = vmatpush.msra.mxu0 0.0
        %433 = vmatpush.msra.mxu0 0.0
        %434 = vmatpush.msra.mxu0 0.0
        %435 = vmatpush.msra.mxu0 0.0
        %436 = vmatpush.msra.mxu0 0.0
        %437 = vmatpush.msra.mxu0 0.0
        %438 = vmatpush.msra.mxu0 0.0
        %439 = vmatpush.msra.mxu0 %v425
        %440 = vmatpush.msra.mxu0 %v424
        %441 = vmatpush.msra.mxu0 %v423
        %442 = vmatpush.msra.mxu0 %v422
        %443 = vmatpush.msra.mxu0 %v421
        %444 = vmatpush.msra.mxu0 %v420
        %445 = vmatpush.msra.mxu0 %v419
        %446 = vmatpush.msra.mxu0 %v418
        %447 = vmatmul.f32.gmra.mxu0 %v429
        %v448 = vpop.f32.mrf.mxu0
        %v449 = vadd.f32 %v426, %v448
        %450 = vdwg.mxu0
        %v451 = vld [vmem:[%s3] sm:$0x1]
        %v452 = vperm.slane %v451, 0
        %v453 = vadd.f32 %v449, %v452
        %v454 = vld [vmem:[%s3 + $0x1] sm:$0x1]
        %v455 = vld [vmem:[%s3 + $0x2] sm:$0x1]
        %vm456 = vcmask 261120
        %v457 = vsel %vm456, %v453, 0.0
        %458 = vadd.xlane.f32.xlu0 %v457
        %v459 = vpop.xlane.xlu0 %458
        %v460 = vrcp.pop 32.0
        %v461 = vmul.f32 32.0, %v460
        %v462 = vsub.f32 1.0, %v461
        %v463 = vmul.f32 %v460, %v462
        %v464 = vadd.f32 %v460, %v463
        %vm465 = vweird.f32 %v460
        %v466 = vsel %vm465, %v460, %v464
        %v467 = vmul.f32 %v459, %v466
        %v468 = vsub.f32 %v453, %v467
        %v469 = vmul.f32 %v468, %v468
        %v470 = vsel %vm456, %v469, 0.0
        %471 = vadd.xlane.f32.xlu0 %v470
        %v472 = vpop.xlane.xlu0 %471
        %v473 = vmul.f32 %v472, %v466
        %v474 = vadd.f32 %v473, 1e-12
        %v475 = vrsqrt.pop %v474
        %v476 = vmul.f32 %v475, %v474
        %v477 = vmul.f32 %v476, %v475
        %v478 = vmul.f32 0.5, %v477
        %v479 = vsub.f32 1.5, %v478
        %v480 = vmul.f32 %v475, %v479
        %vm481 = vweird.f32 %v474
        %vm482 = vweird.f32 %v475
        %vm483 = vmor %vm481, %vm482
        %v484 = vsel %vm483, %v475, %v480
        %v485 = vmul.f32 %v468, %v484
        %v486 = vperm.slane %v454, 0
        %v487 = vmul.f32 %v485, %v486
        %v488 = vperm.slane %v455, 0
        %v489 = vadd.f32 %v487, %v488
        %v490 = vlaneseq
        %v491 = vshrl.u32 %v490, 7
        %vm492 = vcmp.le.s32.totalorder %v411, %v491
        %v493 = vsel %vm492, 0.0, -1e+30
        %v494 = vld [vmem:[%s4] sm:$0xff]
        %v495 = vld [vmem:[%s4 + $0x8] sm:$0xff]
        %v496 = vld [vmem:[%s4 + $0x10] sm:$0xff]
        %v497 = vld [vmem:[%s4 + $0x18] sm:$0xff]
        %v498 = vld [vmem:[%s5] sm:$0x1]
        %v500 = vperm.slane %v498, 0
        %v503 = vsel %vm456, %v489, 0
        %505 = vmatpush.msra.mxu0 0.0
        %506 = vmatpush.msra.mxu0 0.0
        %507 = vmatpush.msra.mxu0 0.0
        %508 = vmatpush.msra.mxu0 0.0
        %509 = vmatpush.msra.mxu0 0.0
        %510 = vmatpush.msra.mxu0 0.0
        %511 = vmatpush.msra.mxu0 0.0
        %512 = vmatpush.msra.mxu0 0.0
        %513 = vmatpush.msra.mxu0 0.0
        %514 = vmatpush.msra.mxu0 0.0
        %515 = vmatpush.msra.mxu0 0.0
        %516 = vmatpush.msra.mxu0 0.0
        %517 = vmatpush.msra.mxu0 %v497
        %518 = vmatpush.msra.mxu0 %v496
        %519 = vmatpush.msra.mxu0 %v495
        %520 = vmatpush.msra.mxu0 %v494
        %521 = vmatmul.f32.gmra.mxu0 %v503
        %v522 = vpop.f32.mrf.mxu0
        %v523 = vadd.f32 %v500, %v522
        %524 = vdwg.mxu0
        %526 = vrot.lane.b32.xlu0 %v523, 120
        %v527 = vpop.permute.xlu0 %526
        %528 = vrot.lane.b32.xlu0 %v523, 112
        %v529 = vpop.permute.xlu0 %528
        %530 = vrot.lane.b32.xlu0 %v523, 104
        %v531 = vpop.permute.xlu0 %530
        %532 = vrot.lane.b32.xlu0 %v523, 96
        %v533 = vpop.permute.xlu0 %532
        %vm534 = vcmask 64512
        %v535 = vsel %vm534, %v523, 0
        %v537 = vsel %vm534, %v533, 0
        %539 = vmatpush.xpose.msra.mxu0 0.0
        %540 = vmatpush.xpose.msra.mxu0 0.0
        %541 = vmatpush.xpose.msra.mxu0 0.0
        %542 = vmatpush.xpose.msra.mxu0 0.0
        %543 = vmatpush.xpose.msra.mxu0 0.0
        %544 = vmatpush.xpose.msra.mxu0 0.0
        %545 = vmatpush.xpose.msra.mxu0 0.0
        %546 = vmatpush.xpose.msra.mxu0 0.0
        %547 = vmatpush.xpose.msra.mxu0 0.0
        %548 = vmatpush.xpose.msra.mxu0 0.0
        %549 = vmatpush.xpose.msra.mxu0 0.0
        %550 = vmatpush.xpose.msra.mxu0 0.0
        %551 = vmatpush.xpose.msra.mxu0 0.0
        %552 = vmatpush.xpose.msra.mxu0 0.0
        %553 = vmatpush.xpose.msra.mxu0 0.0
        %554 = vmatpush.xpose.msra.mxu0 %v537
        %555 = vmatmul.f32.gmra.mxu0 %v535
        %v556 = vpop.f32.mrf.mxu0
        %v557 = vadd.f32 %v493, %v556
        %558 = vdwg.mxu0
        %559 = vrot.lane.b32.xlu0 %v527, 96
        %v560 = vpop.permute.xlu0 %559
        %v561 = vsel %vm534, %v527, 0
        %v563 = vsel %vm534, %v560, 0
        %565 = vmatpush.xpose.msra.mxu0 0.0
        %566 = vmatpush.xpose.msra.mxu0 0.0
        %567 = vmatpush.xpose.msra.mxu0 0.0
        %568 = vmatpush.xpose.msra.mxu0 0.0
        %569 = vmatpush.xpose.msra.mxu0 0.0
        %570 = vmatpush.xpose.msra.mxu0 0.0
        %571 = vmatpush.xpose.msra.mxu0 0.0
        %572 = vmatpush.xpose.msra.mxu0 0.0
        %573 = vmatpush.xpose.msra.mxu0 0.0
        %574 = vmatpush.xpose.msra.mxu0 0.0
        %575 = vmatpush.xpose.msra.mxu0 0.0
        %576 = vmatpush.xpose.msra.mxu0 0.0
        %577 = vmatpush.xpose.msra.mxu0 0.0
        %578 = vmatpush.xpose.msra.mxu0 0.0
        %579 = vmatpush.xpose.msra.mxu0 0.0
        %580 = vmatpush.xpose.msra.mxu0 %v563
        %581 = vmatmul.f32.gmra.mxu0 %v561
        %v582 = vpop.f32.mrf.mxu0
        %v583 = vadd.f32 %v493, %v582
        %584 = vdwg.mxu0
        %585 = vrot.lane.b32.xlu0 %v529, 96
        %v586 = vpop.permute.xlu0 %585
        %v587 = vsel %vm534, %v529, 0
        %v589 = vsel %vm534, %v586, 0
        %591 = vmatpush.xpose.msra.mxu0 0.0
        %592 = vmatpush.xpose.msra.mxu0 0.0
        %593 = vmatpush.xpose.msra.mxu0 0.0
        %594 = vmatpush.xpose.msra.mxu0 0.0
        %595 = vmatpush.xpose.msra.mxu0 0.0
        %596 = vmatpush.xpose.msra.mxu0 0.0
        %597 = vmatpush.xpose.msra.mxu0 0.0
        %598 = vmatpush.xpose.msra.mxu0 0.0
        %599 = vmatpush.xpose.msra.mxu0 0.0
        %600 = vmatpush.xpose.msra.mxu0 0.0
        %601 = vmatpush.xpose.msra.mxu0 0.0
        %602 = vmatpush.xpose.msra.mxu0 0.0
        %603 = vmatpush.xpose.msra.mxu0 0.0
        %604 = vmatpush.xpose.msra.mxu0 0.0
        %605 = vmatpush.xpose.msra.mxu0 0.0
        %606 = vmatpush.xpose.msra.mxu0 %v589
        %607 = vmatmul.f32.gmra.mxu0 %v587
        %v608 = vpop.f32.mrf.mxu0
        %v609 = vadd.f32 %v493, %v608
        %610 = vdwg.mxu0
        %611 = vrot.lane.b32.xlu0 %v531, 96
        %v612 = vpop.permute.xlu0 %611
        %v613 = vsel %vm534, %v531, 0
        %v615 = vsel %vm534, %v612, 0
        %617 = vmatpush.xpose.msra.mxu0 0.0
        %618 = vmatpush.xpose.msra.mxu0 0.0
        %619 = vmatpush.xpose.msra.mxu0 0.0
        %620 = vmatpush.xpose.msra.mxu0 0.0
        %621 = vmatpush.xpose.msra.mxu0 0.0
        %622 = vmatpush.xpose.msra.mxu0 0.0
        %623 = vmatpush.xpose.msra.mxu0 0.0
        %624 = vmatpush.xpose.msra.mxu0 0.0
        %625 = vmatpush.xpose.msra.mxu0 0.0
        %626 = vmatpush.xpose.msra.mxu0 0.0
        %627 = vmatpush.xpose.msra.mxu0 0.0
        %628 = vmatpush.xpose.msra.mxu0 0.0
        %629 = vmatpush.xpose.msra.mxu0 0.0
        %630 = vmatpush.xpose.msra.mxu0 0.0
        %631 = vmatpush.xpose.msra.mxu0 0.0
        %632 = vmatpush.xpose.msra.mxu0 %v615
        %633 = vmatmul.f32.gmra.mxu0 %v613
        %v634 = vpop.f32.mrf.mxu0
        %v635 = vadd.f32 %v493, %v634
        %636 = vdwg.mxu0
        %v637 = vsel %vm534, %v557, -inf
        %638 = vmax.xlane.f32.xlu0 %v637
        %v639 = vpop.xlane.xlu0 %638
        %v640 = vsel %vm534, %v583, -inf
        %641 = vmax.xlane.f32.xlu0 %v640
        %v642 = vpop.xlane.xlu0 %641
        %v643 = vsel %vm534, %v609, -inf
        %644 = vmax.xlane.f32.xlu0 %v643
        %v645 = vpop.xlane.xlu0 %644
        %v646 = vsel %vm534, %v635, -inf
        %647 = vmax.xlane.f32.xlu0 %v646
        %v648 = vpop.xlane.xlu0 %647
        %v649 = vsub.f32 %v557, %v639
        %v650 = vsub.f32 %v583, %v642
        %v651 = vsub.f32 %v609, %v645
        %v652 = vsub.f32 %v635, %v648
        %v653 = vmul.f32 %v649, 1.442695
        %v654 = vpow.pop %v653
        %v655 = vmul.f32 %v650, 1.442695
        %v656 = vpow.pop %v655
        %v657 = vmul.f32 %v651, 1.442695
        %v658 = vpow.pop %v657
        %v659 = vmul.f32 %v652, 1.442695
        %v660 = vpow.pop %v659
        %v661 = vsel %vm534, %v654, 0.0
        %662 = vadd.xlane.f32.xlu0 %v661
        %v663 = vpop.xlane.xlu0 %662
        %v664 = vsel %vm534, %v656, 0.0
        %665 = vadd.xlane.f32.xlu0 %v664
        %v666 = vpop.xlane.xlu0 %665
        %v667 = vsel %vm534, %v658, 0.0
        %668 = vadd.xlane.f32.xlu0 %v667
        %v669 = vpop.xlane.xlu0 %668
        %v670 = vsel %vm534, %v660, 0.0
        %671 = vadd.xlane.f32.xlu0 %v670
        %v672 = vpop.xlane.xlu0 %671
        %v673 = vrcp.pop %v663
        %v674 = vrcp.pop %v666
        %v675 = vrcp.pop %v669
        %v676 = vrcp.pop %v672
        %v677 = vmul.f32 %v654, %v673
        %v678 = vmul.f32 %v656, %v674
        %v679 = vmul.f32 %v658, %v675
        %v680 = vmul.f32 %v660, %v676
        %681 = vrot.lane.b32.xlu0 %v523, 64
        %v682 = vpop.permute.xlu0 %681
        %v685 = vsel %vm534, %v677, 0
        %687 = vmatpush.msra.mxu0 0.0
        %688 = vmatpush.msra.mxu0 0.0
        %689 = vmatpush.msra.mxu0 0.0
        %690 = vmatpush.msra.mxu0 0.0
        %691 = vmatpush.msra.mxu0 0.0
        %692 = vmatpush.msra.mxu0 0.0
        %693 = vmatpush.msra.mxu0 0.0
        %694 = vmatpush.msra.mxu0 0.0
        %695 = vmatpush.msra.mxu0 0.0
        %696 = vmatpush.msra.mxu0 0.0
        %697 = vmatpush.msra.mxu0 0.0
        %698 = vmatpush.msra.mxu0 0.0
        %699 = vmatpush.msra.mxu0 0.0
        %700 = vmatpush.msra.mxu0 0.0
        %701 = vmatpush.msra.mxu0 0.0
        %702 = vmatpush.msra.mxu0 %v682
        %703 = vmatmul.f32.gmra.mxu0 %v685
        %v704 = vpop.f32.mrf.mxu0
        %v705 = vadd.f32 0.0, %v704
        %706 = vdwg.mxu0
        %707 = vrot.lane.b32.xlu0 %v527, 64
        %v708 = vpop.permute.xlu0 %707
        %v711 = vsel %vm534, %v678, 0
        %713 = vmatpush.msra.mxu0 0.0
        %714 = vmatpush.msra.mxu0 0.0
        %715 = vmatpush.msra.mxu0 0.0
        %716 = vmatpush.msra.mxu0 0.0
        %717 = vmatpush.msra.mxu0 0.0
        %718 = vmatpush.msra.mxu0 0.0
        %719 = vmatpush.msra.mxu0 0.0
        %720 = vmatpush.msra.mxu0 0.0
        %721 = vmatpush.msra.mxu0 0.0
        %722 = vmatpush.msra.mxu0 0.0
        %723 = vmatpush.msra.mxu0 0.0
        %724 = vmatpush.msra.mxu0 0.0
        %725 = vmatpush.msra.mxu0 0.0
        %726 = vmatpush.msra.mxu0 0.0
        %727 = vmatpush.msra.mxu0 0.0
        %728 = vmatpush.msra.mxu0 %v708
        %729 = vmatmul.f32.gmra.mxu0 %v711
        %v730 = vpop.f32.mrf.mxu0
        %v731 = vadd.f32 0.0, %v730
        %732 = vdwg.mxu0
        %733 = vrot.lane.b32.xlu0 %v529, 64
        %v734 = vpop.permute.xlu0 %733
        %v737 = vsel %vm534, %v679, 0
        %739 = vmatpush.msra.mxu0 0.0
        %740 = vmatpush.msra.mxu0 0.0
        %741 = vmatpush.msra.mxu0 0.0
        %742 = vmatpush.msra.mxu0 0.0
        %743 = vmatpush.msra.mxu0 0.0
        %744 = vmatpush.msra.mxu0 0.0
        %745 = vmatpush.msra.mxu0 0.0
        %746 = vmatpush.msra.mxu0 0.0
        %747 = vmatpush.msra.mxu0 0.0
        %748 = vmatpush.msra.mxu0 0.0
        %749 = vmatpush.msra.mxu0 0.0
        %750 = vmatpush.msra.mxu0 0.0
        %751 = vmatpush.msra.mxu0 0.0
        %752 = vmatpush.msra.mxu0 0.0
        %753 = vmatpush.msra.mxu0 0.0
        %754 = vmatpush.msra.mxu0 %v734
        %755 = vmatmul.f32.gmra.mxu0 %v737
        %v756 = vpop.f32.mrf.mxu0
        %v757 = vadd.f32 0.0, %v756
        %758 = vdwg.mxu0
        %759 = vrot.lane.b32.xlu0 %v531, 64
        %v760 = vpop.permute.xlu0 %759
        %v763 = vsel %vm534, %v680, 0
        %765 = vmatpush.msra.mxu0 0.0
        %766 = vmatpush.msra.mxu0 0.0
        %767 = vmatpush.msra.mxu0 0.0
        %768 = vmatpush.msra.mxu0 0.0
        %769 = vmatpush.msra.mxu0 0.0
        %770 = vmatpush.msra.mxu0 0.0
        %771 = vmatpush.msra.mxu0 0.0
        %772 = vmatpush.msra.mxu0 0.0
        %773 = vmatpush.msra.mxu0 0.0
        %774 = vmatpush.msra.mxu0 0.0
        %775 = vmatpush.msra.mxu0 0.0
        %776 = vmatpush.msra.mxu0 0.0
        %777 = vmatpush.msra.mxu0 0.0
        %778 = vmatpush.msra.mxu0 0.0
        %779 = vmatpush.msra.mxu0 0.0
        %780 = vmatpush.msra.mxu0 %v760
        %781 = vmatmul.f32.gmra.mxu0 %v763
        %v782 = vpop.f32.mrf.mxu0
        %v783 = vadd.f32 0.0, %v782
        %784 = vdwg.mxu0
        %786 = vrot.lane.b32.xlu0 %v731, 8
        %v787 = vpop.permute.xlu0 %786
        %790 = vrot.lane.b32.xlu0 %v757, 16
        %v791 = vpop.permute.xlu0 %790
        %794 = vrot.lane.b32.xlu0 %v783, 24
        %v795 = vpop.permute.xlu0 %794
        %v797 = vsel %vm534, %v705, %v787
        %vm798 = vcmask 130048
        %v799 = vsel %vm798, %v797, %v791
        %vm800 = vcmask 195584
        %v801 = vsel %vm800, %v799, %v795
        %v802 = vld [vmem:[%s6] sm:$0xff]
        %v803 = vld [vmem:[%s6 + $0x8] sm:$0xff]
        %v804 = vld [vmem:[%s6 + $0x10] sm:$0xff]
        %v805 = vld [vmem:[%s6 + $0x18] sm:$0xff]
        %v806 = vld [vmem:[%s3 + $0x3] sm:$0x1]
        %v807 = vperm.slane %v806, 0
        %v809 = vsel %vm456, %v801, 0
        %811 = vmatpush.msra.mxu0 0.0
        %812 = vmatpush.msra.mxu0 0.0
        %813 = vmatpush.msra.mxu0 0.0
        %814 = vmatpush.msra.mxu0 0.0
        %815 = vmatpush.msra.mxu0 0.0
        %816 = vmatpush.msra.mxu0 0.0
        %817 = vmatpush.msra.mxu0 0.0
        %818 = vmatpush.msra.mxu0 0.0
        %819 = vmatpush.msra.mxu0 0.0
        %820 = vmatpush.msra.mxu0 0.0
        %821 = vmatpush.msra.mxu0 0.0
        %822 = vmatpush.msra.mxu0 0.0
        %823 = vmatpush.msra.mxu0 %v805
        %824 = vmatpush.msra.mxu0 %v804
        %825 = vmatpush.msra.mxu0 %v803
        %826 = vmatpush.msra.mxu0 %v802
        %827 = vmatmul.f32.gmra.mxu0 %v809
        %v828 = vpop.f32.mrf.mxu0
        %v829 = vadd.f32 %v807, %v828
        %830 = vdwg.mxu0
        %v831 = vadd.f32 %v489, %v829
        %v832 = vld [vmem:[%s3 + $0x4] sm:$0x1]
        %v833 = vld [vmem:[%s3 + $0x5] sm:$0x1]
        %v834 = vsel %vm456, %v831, 0.0
        %835 = vadd.xlane.f32.xlu0 %v834
        %v836 = vpop.xlane.xlu0 %835
        %v837 = vmul.f32 %v836, %v466
        %v838 = vsub.f32 %v831, %v837
        %v839 = vmul.f32 %v838, %v838
        %v840 = vsel %vm456, %v839, 0.0
        %841 = vadd.xlane.f32.xlu0 %v840
        %v842 = vpop.xlane.xlu0 %841
        %v843 = vmul.f32 %v842, %v466
        %v844 = vadd.f32 %v843, 1e-12
        %v845 = vrsqrt.pop %v844
        %v846 = vmul.f32 %v845, %v844
        %v847 = vmul.f32 %v846, %v845
        %v848 = vmul.f32 0.5, %v847
        %v849 = vsub.f32 1.5, %v848
        %v850 = vmul.f32 %v845, %v849
        %vm851 = vweird.f32 %v844
        %vm852 = vweird.f32 %v845
        %vm853 = vmor %vm851, %vm852
        %v854 = vsel %vm853, %v845, %v850
        %v855 = vmul.f32 %v838, %v854
        %v856 = vperm.slane %v832, 0
        %v857 = vmul.f32 %v855, %v856
        %v858 = vperm.slane %v833, 0
        %v859 = vadd.f32 %v857, %v858
        %v860 = vld [vmem:[%s7] sm:$0xff]
        %v861 = vld [vmem:[%s7 + $0x8] sm:$0xff]
        %v862 = vld [vmem:[%s7 + $0x10] sm:$0xff]
        %v863 = vld [vmem:[%s7 + $0x18] sm:$0xff]
        %v864 = vld [vmem:[%s8] sm:$0x1]
        %v866 = vperm.slane %v864, 0
        %v869 = vsel %vm456, %v859, 0
        %871 = vmatpush.msra.mxu0 0.0
        %872 = vmatpush.msra.mxu0 0.0
        %873 = vmatpush.msra.mxu0 0.0
        %874 = vmatpush.msra.mxu0 0.0
        %875 = vmatpush.msra.mxu0 0.0
        %876 = vmatpush.msra.mxu0 0.0
        %877 = vmatpush.msra.mxu0 0.0
        %878 = vmatpush.msra.mxu0 0.0
        %879 = vmatpush.msra.mxu0 0.0
        %880 = vmatpush.msra.mxu0 0.0
        %881 = vmatpush.msra.mxu0 0.0
        %882 = vmatpush.msra.mxu0 0.0
        %883 = vmatpush.msra.mxu0 %v863
        %884 = vmatpush.msra.mxu0 %v862
        %885 = vmatpush.msra.mxu0 %v861
        %886 = vmatpush.msra.mxu0 %v860
        %887 = vmatmul.f32.gmra.mxu0 %v869
        %v888 = vpop.f32.mrf.mxu0
        %v889 = vadd.f32 %v866, %v888
        %890 = vdwg.mxu0
        %v891 = vmul.f32 %v889, 0.5
        %v892 = vmul.f32 %v889, 0.044715
        %v893 = vmul.f32 %v892, %v889
        %v894 = vmul.f32 %v893, %v889
        %v895 = vadd.f32 %v889, %v894
        %v896 = vmul.f32 %v895, 0.7978846
        %v897 = vtanh.pop %v896
        %v898 = vadd.f32 %v897, 1.0
        %v899 = vmul.f32 %v891, %v898
        %v900 = vld [vmem:[%s9] sm:$0xff]
        %v901 = vld [vmem:[%s9 + $0x8] sm:$0xff]
        %v902 = vld [vmem:[%s9 + $0x10] sm:$0xff]
        %v903 = vld [vmem:[%s9 + $0x18] sm:$0xff]
        %v904 = vld [vmem:[%s9 + $0x20] sm:$0xff]
        %v905 = vld [vmem:[%s9 + $0x28] sm:$0xff]
        %v906 = vld [vmem:[%s9 + $0x30] sm:$0xff]
        %v907 = vld [vmem:[%s9 + $0x38] sm:$0xff]
        %v908 = vld [vmem:[%s9 + $0x40] sm:$0xff]
        %v909 = vld [vmem:[%s9 + $0x48] sm:$0xff]
        %v910 = vld [vmem:[%s9 + $0x50] sm:$0xff]
        %v911 = vld [vmem:[%s9 + $0x58] sm:$0xff]
        %v912 = vld [vmem:[%s9 + $0x60] sm:$0xff]
        %v913 = vld [vmem:[%s9 + $0x68] sm:$0xff]
        %v914 = vld [vmem:[%s9 + $0x70] sm:$0xff]
        %v915 = vld [vmem:[%s9 + $0x78] sm:$0xff]
        %v916 = vld [vmem:[%s3 + $0x6] sm:$0x1]
        %v917 = vperm.slane %v916, 0
        %918 = vmatpush.msra.mxu0 %v915
        %919 = vmatpush.msra.mxu0 %v914
        %920 = vmatpush.msra.mxu0 %v913
        %921 = vmatpush.msra.mxu0 %v912
        %922 = vmatpush.msra.mxu0 %v911
        %923 = vmatpush.msra.mxu0 %v910
        %924 = vmatpush.msra.mxu0 %v909
        %925 = vmatpush.msra.mxu0 %v908
        %926 = vmatpush.msra.mxu0 %v907
        %927 = vmatpush.msra.mxu0 %v906
        %928 = vmatpush.msra.mxu0 %v905
        %929 = vmatpush.msra.mxu0 %v904
        %930 = vmatpush.msra.mxu0 %v903
        %931 = vmatpush.msra.mxu0 %v902
        %932 = vmatpush.msra.mxu0 %v901
        %933 = vmatpush.msra.mxu0 %v900
        %934 = vmatmul.f32.gmra.mxu0 %v899
        %v935 = vpop.f32.mrf.mxu0
        %v936 = vadd.f32 %v917, %v935
        %937 = vdwg.mxu0
        %v938 = vadd.f32 %v859, %v936
        %v939 = vld [vmem:[%s3 + $0x7] sm:$0x1]
        %v940 = vld [vmem:[%s3 + $0x8] sm:$0x1]
        %v941 = vsel %vm456, %v938, 0.0
        %942 = vadd.xlane.f32.xlu0 %v941
        %v943 = vpop.xlane.xlu0 %942
        %v944 = vmul.f32 %v943, %v466
        %v945 = vsub.f32 %v938, %v944
        %v946 = vmul.f32 %v945, %v945
        %v947 = vsel %vm456, %v946, 0.0
        %948 = vadd.xlane.f32.xlu0 %v947
        %v949 = vpop.xlane.xlu0 %948
        %v950 = vmul.f32 %v949, %v466
        %v951 = vadd.f32 %v950, 1e-12
        %v952 = vrsqrt.pop %v951
        %v953 = vmul.f32 %v952, %v951
        %v954 = vmul.f32 %v953, %v952
        %v955 = vmul.f32 0.5, %v954
        %v956 = vsub.f32 1.5, %v955
        %v957 = vmul.f32 %v952, %v956
        %vm958 = vweird.f32 %v951
        %vm959 = vweird.f32 %v952
        %vm960 = vmor %vm958, %vm959
        %v961 = vsel %vm960, %v952, %v957
        %v962 = vmul.f32 %v945, %v961
        %v963 = vperm.slane %v939, 0
        %v964 = vmul.f32 %v962, %v963
        %v965 = vperm.slane %v940, 0
        %v966 = vadd.f32 %v964, %v965
        %s967 = scalar_lea.vmem %s4, 32
        %v968 = vld [vmem:[%s967] sm:$0xff]
        %v969 = vld [vmem:[%s967 + $0x8] sm:$0xff]
        %v970 = vld [vmem:[%s967 + $0x10] sm:$0xff]
        %v971 = vld [vmem:[%s967 + $0x18] sm:$0xff]
        %s972 = scalar_lea.vmem %s5, 1
        %v973 = vld [vmem:[%s972] sm:$0x1]
        %v975 = vperm.slane %v973, 0
        %v978 = vsel %vm456, %v966, 0
        %980 = vmatpush.msra.mxu0 0.0
        %981 = vmatpush.msra.mxu0 0.0
        %982 = vmatpush.msra.mxu0 0.0
        %983 = vmatpush.msra.mxu0 0.0
        %984 = vmatpush.msra.mxu0 0.0
        %985 = vmatpush.msra.mxu0 0.0
        %986 = vmatpush.msra.mxu0 0.0
        %987 = vmatpush.msra.mxu0 0.0
        %988 = vmatpush.msra.mxu0 0.0
        %989 = vmatpush.msra.mxu0 0.0
        %990 = vmatpush.msra.mxu0 0.0
        %991 = vmatpush.msra.mxu0 0.0
        %992 = vmatpush.msra.mxu0 %v971
        %993 = vmatpush.msra.mxu0 %v970
        %994 = vmatpush.msra.mxu0 %v969
        %995 = vmatpush.msra.mxu0 %v968
        %996 = vmatmul.f32.gmra.mxu0 %v978
        %v997 = vpop.f32.mrf.mxu0
        %v998 = vadd.f32 %v975, %v997
        %999 = vdwg.mxu0
        %1001 = vrot.lane.b32.xlu0 %v998, 120
        %v1002 = vpop.permute.xlu0 %1001
        %1003 = vrot.lane.b32.xlu0 %v998, 112
        %v1004 = vpop.permute.xlu0 %1003
        %1005 = vrot.lane.b32.xlu0 %v998, 104
        %v1006 = vpop.permute.xlu0 %1005
        %1007 = vrot.lane.b32.xlu0 %v998, 96
        %v1008 = vpop.permute.xlu0 %1007
        %v1009 = vsel %vm534, %v998, 0
        %v1011 = vsel %vm534, %v1008, 0
        %1013 = vmatpush.xpose.msra.mxu0 0.0
        %1014 = vmatpush.xpose.msra.mxu0 0.0
        %1015 = vmatpush.xpose.msra.mxu0 0.0
        %1016 = vmatpush.xpose.msra.mxu0 0.0
        %1017 = vmatpush.xpose.msra.mxu0 0.0
        %1018 = vmatpush.xpose.msra.mxu0 0.0
        %1019 = vmatpush.xpose.msra.mxu0 0.0
        %1020 = vmatpush.xpose.msra.mxu0 0.0
        %1021 = vmatpush.xpose.msra.mxu0 0.0
        %1022 = vmatpush.xpose.msra.mxu0 0.0
        %1023 = vmatpush.xpose.msra.mxu0 0.0
        %1024 = vmatpush.xpose.msra.mxu0 0.0
        %1025 = vmatpush.xpose.msra.mxu0 0.0
        %1026 = vmatpush.xpose.msra.mxu0 0.0
        %1027 = vmatpush.xpose.msra.mxu0 0.0
        %1028 = vmatpush.xpose.msra.mxu0 %v1011
        %1029 = vmatmul.f32.gmra.mxu0 %v1009
        %v1030 = vpop.f32.mrf.mxu0
        %v1031 = vadd.f32 %v493, %v1030
        %1032 = vdwg.mxu0
        %1033 = vrot.lane.b32.xlu0 %v1002, 96
        %v1034 = vpop.permute.xlu0 %1033
        %v1035 = vsel %vm534, %v1002, 0
        %v1037 = vsel %vm534, %v1034, 0
        %1039 = vmatpush.xpose.msra.mxu0 0.0
        %1040 = vmatpush.xpose.msra.mxu0 0.0
        %1041 = vmatpush.xpose.msra.mxu0 0.0
        %1042 = vmatpush.xpose.msra.mxu0 0.0
        %1043 = vmatpush.xpose.msra.mxu0 0.0
        %1044 = vmatpush.xpose.msra.mxu0 0.0
        %1045 = vmatpush.xpose.msra.mxu0 0.0
        %1046 = vmatpush.xpose.msra.mxu0 0.0
        %1047 = vmatpush.xpose.msra.mxu0 0.0
        %1048 = vmatpush.xpose.msra.mxu0 0.0
        %1049 = vmatpush.xpose.msra.mxu0 0.0
        %1050 = vmatpush.xpose.msra.mxu0 0.0
        %1051 = vmatpush.xpose.msra.mxu0 0.0
        %1052 = vmatpush.xpose.msra.mxu0 0.0
        %1053 = vmatpush.xpose.msra.mxu0 0.0
        %1054 = vmatpush.xpose.msra.mxu0 %v1037
        %1055 = vmatmul.f32.gmra.mxu0 %v1035
        %v1056 = vpop.f32.mrf.mxu0
        %v1057 = vadd.f32 %v493, %v1056
        %1058 = vdwg.mxu0
        %1059 = vrot.lane.b32.xlu0 %v1004, 96
        %v1060 = vpop.permute.xlu0 %1059
        %v1061 = vsel %vm534, %v1004, 0
        %v1063 = vsel %vm534, %v1060, 0
        %1065 = vmatpush.xpose.msra.mxu0 0.0
        %1066 = vmatpush.xpose.msra.mxu0 0.0
        %1067 = vmatpush.xpose.msra.mxu0 0.0
        %1068 = vmatpush.xpose.msra.mxu0 0.0
        %1069 = vmatpush.xpose.msra.mxu0 0.0
        %1070 = vmatpush.xpose.msra.mxu0 0.0
        %1071 = vmatpush.xpose.msra.mxu0 0.0
        %1072 = vmatpush.xpose.msra.mxu0 0.0
        %1073 = vmatpush.xpose.msra.mxu0 0.0
        %1074 = vmatpush.xpose.msra.mxu0 0.0
        %1075 = vmatpush.xpose.msra.mxu0 0.0
        %1076 = vmatpush.xpose.msra.mxu0 0.0
        %1077 = vmatpush.xpose.msra.mxu0 0.0
        %1078 = vmatpush.xpose.msra.mxu0 0.0
        %1079 = vmatpush.xpose.msra.mxu0 0.0
        %1080 = vmatpush.xpose.msra.mxu0 %v1063
        %1081 = vmatmul.f32.gmra.mxu0 %v1061
        %v1082 = vpop.f32.mrf.mxu0
        %v1083 = vadd.f32 %v493, %v1082
        %1084 = vdwg.mxu0
        %1085 = vrot.lane.b32.xlu0 %v1006, 96
        %v1086 = vpop.permute.xlu0 %1085
        %v1087 = vsel %vm534, %v1006, 0
        %v1089 = vsel %vm534, %v1086, 0
        %1091 = vmatpush.xpose.msra.mxu0 0.0
        %1092 = vmatpush.xpose.msra.mxu0 0.0
        %1093 = vmatpush.xpose.msra.mxu0 0.0
        %1094 = vmatpush.xpose.msra.mxu0 0.0
        %1095 = vmatpush.xpose.msra.mxu0 0.0
        %1096 = vmatpush.xpose.msra.mxu0 0.0
        %1097 = vmatpush.xpose.msra.mxu0 0.0
        %1098 = vmatpush.xpose.msra.mxu0 0.0
        %1099 = vmatpush.xpose.msra.mxu0 0.0
        %1100 = vmatpush.xpose.msra.mxu0 0.0
        %1101 = vmatpush.xpose.msra.mxu0 0.0
        %1102 = vmatpush.xpose.msra.mxu0 0.0
        %1103 = vmatpush.xpose.msra.mxu0 0.0
        %1104 = vmatpush.xpose.msra.mxu0 0.0
        %1105 = vmatpush.xpose.msra.mxu0 0.0
        %1106 = vmatpush.xpose.msra.mxu0 %v1089
        %1107 = vmatmul.f32.gmra.mxu0 %v1087
        %v1108 = vpop.f32.mrf.mxu0
        %v1109 = vadd.f32 %v493, %v1108
        %1110 = vdwg.mxu0
        %v1111 = vsel %vm534, %v1031, -inf
        %1112 = vmax.xlane.f32.xlu0 %v1111
        %v1113 = vpop.xlane.xlu0 %1112
        %v1114 = vsel %vm534, %v1057, -inf
        %1115 = vmax.xlane.f32.xlu0 %v1114
        %v1116 = vpop.xlane.xlu0 %1115
        %v1117 = vsel %vm534, %v1083, -inf
        %1118 = vmax.xlane.f32.xlu0 %v1117
        %v1119 = vpop.xlane.xlu0 %1118
        %v1120 = vsel %vm534, %v1109, -inf
        %1121 = vmax.xlane.f32.xlu0 %v1120
        %v1122 = vpop.xlane.xlu0 %1121
        %v1123 = vsub.f32 %v1031, %v1113
        %v1124 = vsub.f32 %v1057, %v1116
        %v1125 = vsub.f32 %v1083, %v1119
        %v1126 = vsub.f32 %v1109, %v1122
        %v1127 = vmul.f32 %v1123, 1.442695
        %v1128 = vpow.pop %v1127
        %v1129 = vmul.f32 %v1124, 1.442695
        %v1130 = vpow.pop %v1129
        %v1131 = vmul.f32 %v1125, 1.442695
        %v1132 = vpow.pop %v1131
        %v1133 = vmul.f32 %v1126, 1.442695
        %v1134 = vpow.pop %v1133
        %v1135 = vsel %vm534, %v1128, 0.0
        %1136 = vadd.xlane.f32.xlu0 %v1135
        %v1137 = vpop.xlane.xlu0 %1136
        %v1138 = vsel %vm534, %v1130, 0.0
        %1139 = vadd.xlane.f32.xlu0 %v1138
        %v1140 = vpop.xlane.xlu0 %1139
        %v1141 = vsel %vm534, %v1132, 0.0
        %1142 = vadd.xlane.f32.xlu0 %v1141
        %v1143 = vpop.xlane.xlu0 %1142
        %v1144 = vsel %vm534, %v1134, 0.0
        %1145 = vadd.xlane.f32.xlu0 %v1144
        %v1146 = vpop.xlane.xlu0 %1145
        %v1147 = vrcp.pop %v1137
        %v1148 = vrcp.pop %v1140
        %v1149 = vrcp.pop %v1143
        %v1150 = vrcp.pop %v1146
        %v1151 = vmul.f32 %v1128, %v1147
        %v1152 = vmul.f32 %v1130, %v1148
        %v1153 = vmul.f32 %v1132, %v1149
        %v1154 = vmul.f32 %v1134, %v1150
        %1155 = vrot.lane.b32.xlu0 %v998, 64
        %v1156 = vpop.permute.xlu0 %1155
        %v1159 = vsel %vm534, %v1151, 0
        %1161 = vmatpush.msra.mxu0 0.0
        %1162 = vmatpush.msra.mxu0 0.0
        %1163 = vmatpush.msra.mxu0 0.0
        %1164 = vmatpush.msra.mxu0 0.0
        %1165 = vmatpush.msra.mxu0 0.0
        %1166 = vmatpush.msra.mxu0 0.0
        %1167 = vmatpush.msra.mxu0 0.0
        %1168 = vmatpush.msra.mxu0 0.0
        %1169 = vmatpush.msra.mxu0 0.0
        %1170 = vmatpush.msra.mxu0 0.0
        %1171 = vmatpush.msra.mxu0 0.0
        %1172 = vmatpush.msra.mxu0 0.0
        %1173 = vmatpush.msra.mxu0 0.0
        %1174 = vmatpush.msra.mxu0 0.0
        %1175 = vmatpush.msra.mxu0 0.0
        %1176 = vmatpush.msra.mxu0 %v1156
        %1177 = vmatmul.f32.gmra.mxu0 %v1159
        %v1178 = vpop.f32.mrf.mxu0
        %v1179 = vadd.f32 0.0, %v1178
        %1180 = vdwg.mxu0
        %1181 = vrot.lane.b32.xlu0 %v1002, 64
        %v1182 = vpop.permute.xlu0 %1181
        %v1185 = vsel %vm534, %v1152, 0
        %1187 = vmatpush.msra.mxu0 0.0
        %1188 = vmatpush.msra.mxu0 0.0
        %1189 = vmatpush.msra.mxu0 0.0
        %1190 = vmatpush.msra.mxu0 0.0
        %1191 = vmatpush.msra.mxu0 0.0
        %1192 = vmatpush.msra.mxu0 0.0
        %1193 = vmatpush.msra.mxu0 0.0
        %1194 = vmatpush.msra.mxu0 0.0
        %1195 = vmatpush.msra.mxu0 0.0
        %1196 = vmatpush.msra.mxu0 0.0
        %1197 = vmatpush.msra.mxu0 0.0
        %1198 = vmatpush.msra.mxu0 0.0
        %1199 = vmatpush.msra.mxu0 0.0
        %1200 = vmatpush.msra.mxu0 0.0
        %1201 = vmatpush.msra.mxu0 0.0
        %1202 = vmatpush.msra.mxu0 %v1182
        %1203 = vmatmul.f32.gmra.mxu0 %v1185
        %v1204 = vpop.f32.mrf.mxu0
        %v1205 = vadd.f32 0.0, %v1204
        %1206 = vdwg.mxu0
        %1207 = vrot.lane.b32.xlu0 %v1004, 64
        %v1208 = vpop.permute.xlu0 %1207
        %v1211 = vsel %vm534, %v1153, 0
        %1213 = vmatpush.msra.mxu0 0.0
        %1214 = vmatpush.msra.mxu0 0.0
        %1215 = vmatpush.msra.mxu0 0.0
        %1216 = vmatpush.msra.mxu0 0.0
        %1217 = vmatpush.msra.mxu0 0.0
        %1218 = vmatpush.msra.mxu0 0.0
        %1219 = vmatpush.msra.mxu0 0.0
        %1220 = vmatpush.msra.mxu0 0.0
        %1221 = vmatpush.msra.mxu0 0.0
        %1222 = vmatpush.msra.mxu0 0.0
        %1223 = vmatpush.msra.mxu0 0.0
        %1224 = vmatpush.msra.mxu0 0.0
        %1225 = vmatpush.msra.mxu0 0.0
        %1226 = vmatpush.msra.mxu0 0.0
        %1227 = vmatpush.msra.mxu0 0.0
        %1228 = vmatpush.msra.mxu0 %v1208
        %1229 = vmatmul.f32.gmra.mxu0 %v1211
        %v1230 = vpop.f32.mrf.mxu0
        %v1231 = vadd.f32 0.0, %v1230
        %1232 = vdwg.mxu0
        %1233 = vrot.lane.b32.xlu0 %v1006, 64
        %v1234 = vpop.permute.xlu0 %1233
        %v1237 = vsel %vm534, %v1154, 0
        %1239 = vmatpush.msra.mxu0 0.0
        %1240 = vmatpush.msra.mxu0 0.0
        %1241 = vmatpush.msra.mxu0 0.0
        %1242 = vmatpush.msra.mxu0 0.0
        %1243 = vmatpush.msra.mxu0 0.0
        %1244 = vmatpush.msra.mxu0 0.0
        %1245 = vmatpush.msra.mxu0 0.0
        %1246 = vmatpush.msra.mxu0 0.0
        %1247 = vmatpush.msra.mxu0 0.0
        %1248 = vmatpush.msra.mxu0 0.0
        %1249 = vmatpush.msra.mxu0 0.0
        %1250 = vmatpush.msra.mxu0 0.0
        %1251 = vmatpush.msra.mxu0 0.0
        %1252 = vmatpush.msra.mxu0 0.0
        %1253 = vmatpush.msra.mxu0 0.0
        %1254 = vmatpush.msra.mxu0 %v1234
        %1255 = vmatmul.f32.gmra.mxu0 %v1237
        %v1256 = vpop.f32.mrf.mxu0
        %v1257 = vadd.f32 0.0, %v1256
        %1258 = vdwg.mxu0
        %1260 = vrot.lane.b32.xlu0 %v1205, 8
        %v1261 = vpop.permute.xlu0 %1260
        %1264 = vrot.lane.b32.xlu0 %v1231, 16
        %v1265 = vpop.permute.xlu0 %1264
        %1268 = vrot.lane.b32.xlu0 %v1257, 24
        %v1269 = vpop.permute.xlu0 %1268
        %v1271 = vsel %vm534, %v1179, %v1261
        %v1272 = vsel %vm798, %v1271, %v1265
        %v1273 = vsel %vm800, %v1272, %v1269
        %s1274 = scalar_lea.vmem %s6, 32
        %v1275 = vld [vmem:[%s1274] sm:$0xff]
        %v1276 = vld [vmem:[%s1274 + $0x8] sm:$0xff]
        %v1277 = vld [vmem:[%s1274 + $0x10] sm:$0xff]
        %v1278 = vld [vmem:[%s1274 + $0x18] sm:$0xff]
        %v1279 = vld [vmem:[%s3 + $0x9] sm:$0x1]
        %v1280 = vperm.slane %v1279, 0
        %v1282 = vsel %vm456, %v1273, 0
        %1284 = vmatpush.msra.mxu0 0.0
        %1285 = vmatpush.msra.mxu0 0.0
        %1286 = vmatpush.msra.mxu0 0.0
        %1287 = vmatpush.msra.mxu0 0.0
        %1288 = vmatpush.msra.mxu0 0.0
        %1289 = vmatpush.msra.mxu0 0.0
        %1290 = vmatpush.msra.mxu0 0.0
        %1291 = vmatpush.msra.mxu0 0.0
        %1292 = vmatpush.msra.mxu0 0.0
        %1293 = vmatpush.msra.mxu0 0.0
        %1294 = vmatpush.msra.mxu0 0.0
        %1295 = vmatpush.msra.mxu0 0.0
        %1296 = vmatpush.msra.mxu0 %v1278
        %1297 = vmatpush.msra.mxu0 %v1277
        %1298 = vmatpush.msra.mxu0 %v1276
        %1299 = vmatpush.msra.mxu0 %v1275
        %1300 = vmatmul.f32.gmra.mxu0 %v1282
        %v1301 = vpop.f32.mrf.mxu0
        %v1302 = vadd.f32 %v1280, %v1301
        %1303 = vdwg.mxu0
        %v1304 = vadd.f32 %v966, %v1302
        %v1305 = vld [vmem:[%s3 + $0xa] sm:$0x1]
        %v1306 = vld [vmem:[%s3 + $0xb] sm:$0x1]
        %v1307 = vsel %vm456, %v1304, 0.0
        %1308 = vadd.xlane.f32.xlu0 %v1307
        %v1309 = vpop.xlane.xlu0 %1308
        %v1310 = vmul.f32 %v1309, %v466
        %v1311 = vsub.f32 %v1304, %v1310
        %v1312 = vmul.f32 %v1311, %v1311
        %v1313 = vsel %vm456, %v1312, 0.0
        %1314 = vadd.xlane.f32.xlu0 %v1313
        %v1315 = vpop.xlane.xlu0 %1314
        %v1316 = vmul.f32 %v1315, %v466
        %v1317 = vadd.f32 %v1316, 1e-12
        %v1318 = vrsqrt.pop %v1317
        %v1319 = vmul.f32 %v1318, %v1317
        %v1320 = vmul.f32 %v1319, %v1318
        %v1321 = vmul.f32 0.5, %v1320
        %v1322 = vsub.f32 1.5, %v1321
        %v1323 = vmul.f32 %v1318, %v1322
        %vm1324 = vweird.f32 %v1317
        %vm1325 = vweird.f32 %v1318
        %vm1326 = vmor %vm1324, %vm1325
        %v1327 = vsel %vm1326, %v1318, %v1323
        %v1328 = vmul.f32 %v1311, %v1327
        %v1329 = vperm.slane %v1305, 0
        %v1330 = vmul.f32 %v1328, %v1329
        %v1331 = vperm.slane %v1306, 0
        %v1332 = vadd.f32 %v1330, %v1331
        %s1333 = scalar_lea.vmem %s7, 32
        %v1334 = vld [vmem:[%s1333] sm:$0xff]
        %v1335 = vld [vmem:[%s1333 + $0x8] sm:$0xff]
        %v1336 = vld [vmem:[%s1333 + $0x10] sm:$0xff]
        %v1337 = vld [vmem:[%s1333 + $0x18] sm:$0xff]
        %s1338 = scalar_lea.vmem %s8, 1
        %v1339 = vld [vmem:[%s1338] sm:$0x1]
        %v1341 = vperm.slane %v1339, 0
        %v1344 = vsel %vm456, %v1332, 0
        %1346 = vmatpush.msra.mxu0 0.0
        %1347 = vmatpush.msra.mxu0 0.0
        %1348 = vmatpush.msra.mxu0 0.0
        %1349 = vmatpush.msra.mxu0 0.0
        %1350 = vmatpush.msra.mxu0 0.0
        %1351 = vmatpush.msra.mxu0 0.0
        %1352 = vmatpush.msra.mxu0 0.0
        %1353 = vmatpush.msra.mxu0 0.0
        %1354 = vmatpush.msra.mxu0 0.0
        %1355 = vmatpush.msra.mxu0 0.0
        %1356 = vmatpush.msra.mxu0 0.0
        %1357 = vmatpush.msra.mxu0 0.0
        %1358 = vmatpush.msra.mxu0 %v1337
        %1359 = vmatpush.msra.mxu0 %v1336
        %1360 = vmatpush.msra.mxu0 %v1335
        %1361 = vmatpush.msra.mxu0 %v1334
        %1362 = vmatmul.f32.gmra.mxu0 %v1344
        %v1363 = vpop.f32.mrf.mxu0
        %v1364 = vadd.f32 %v1341, %v1363
        %1365 = vdwg.mxu0
        %v1366 = vmul.f32 %v1364, 0.5
        %v1367 = vmul.f32 %v1364, 0.044715
        %v1368 = vmul.f32 %v1367, %v1364
        %v1369 = vmul.f32 %v1368, %v1364
        %v1370 = vadd.f32 %v1364, %v1369
        %v1371 = vmul.f32 %v1370, 0.7978846
        %v1372 = vtanh.pop %v1371
        %v1373 = vadd.f32 %v1372, 1.0
        %v1374 = vmul.f32 %v1366, %v1373
        %s1375 = scalar_lea.vmem %s9, 128
        %v1376 = vld [vmem:[%s1375] sm:$0xff]
        %v1377 = vld [vmem:[%s1375 + $0x8] sm:$0xff]
        %v1378 = vld [vmem:[%s1375 + $0x10] sm:$0xff]
        %v1379 = vld [vmem:[%s1375 + $0x18] sm:$0xff]
        %v1380 = vld [vmem:[%s1375 + $0x20] sm:$0xff]
        %v1381 = vld [vmem:[%s1375 + $0x28] sm:$0xff]
        %v1382 = vld [vmem:[%s1375 + $0x30] sm:$0xff]
        %v1383 = vld [vmem:[%s1375 + $0x38] sm:$0xff]
        %v1384 = vld [vmem:[%s1375 + $0x40] sm:$0xff]
        %v1385 = vld [vmem:[%s1375 + $0x48] sm:$0xff]
        %v1386 = vld [vmem:[%s1375 + $0x50] sm:$0xff]
        %v1387 = vld [vmem:[%s1375 + $0x58] sm:$0xff]
        %v1388 = vld [vmem:[%s1375 + $0x60] sm:$0xff]
        %v1389 = vld [vmem:[%s1375 + $0x68] sm:$0xff]
        %v1390 = vld [vmem:[%s1375 + $0x70] sm:$0xff]
        %v1391 = vld [vmem:[%s1375 + $0x78] sm:$0xff]
        %v1392 = vld [vmem:[%s3 + $0xc] sm:$0x1]
        %v1393 = vperm.slane %v1392, 0
        %1394 = vmatpush.msra.mxu0 %v1391
        %1395 = vmatpush.msra.mxu0 %v1390
        %1396 = vmatpush.msra.mxu0 %v1389
        %1397 = vmatpush.msra.mxu0 %v1388
        %1398 = vmatpush.msra.mxu0 %v1387
        %1399 = vmatpush.msra.mxu0 %v1386
        %1400 = vmatpush.msra.mxu0 %v1385
        %1401 = vmatpush.msra.mxu0 %v1384
        %1402 = vmatpush.msra.mxu0 %v1383
        %1403 = vmatpush.msra.mxu0 %v1382
        %1404 = vmatpush.msra.mxu0 %v1381
        %1405 = vmatpush.msra.mxu0 %v1380
        %1406 = vmatpush.msra.mxu0 %v1379
        %1407 = vmatpush.msra.mxu0 %v1378
        %1408 = vmatpush.msra.mxu0 %v1377
        %1409 = vmatpush.msra.mxu0 %v1376
        %1410 = vmatmul.f32.gmra.mxu0 %v1374
        %v1411 = vpop.f32.mrf.mxu0
        %v1412 = vadd.f32 %v1393, %v1411
        %1413 = vdwg.mxu0
        %v1414 = vadd.f32 %v1332, %v1412
        %v1415 = vld [vmem:[%s3 + $0xd] sm:$0x1]
        %v1416 = vld [vmem:[%s3 + $0xe] sm:$0x1]
        %v1417 = vsel %vm456, %v1414, 0.0
        %1418 = vadd.xlane.f32.xlu0 %v1417
        %v1419 = vpop.xlane.xlu0 %1418
        %v1420 = vmul.f32 %v1419, %v466
        %v1421 = vsub.f32 %v1414, %v1420
        %v1422 = vmul.f32 %v1421, %v1421
        %v1423 = vsel %vm456, %v1422, 0.0
        %1424 = vadd.xlane.f32.xlu0 %v1423
        %v1425 = vpop.xlane.xlu0 %1424
        %v1426 = vmul.f32 %v1425, %v466
        %v1427 = vadd.f32 %v1426, 1e-12
        %v1428 = vrsqrt.pop %v1427
        %v1429 = vmul.f32 %v1428, %v1427
        %v1430 = vmul.f32 %v1429, %v1428
        %v1431 = vmul.f32 0.5, %v1430
        %v1432 = vsub.f32 1.5, %v1431
        %v1433 = vmul.f32 %v1428, %v1432
        %vm1434 = vweird.f32 %v1427
        %vm1435 = vweird.f32 %v1428
        %vm1436 = vmor %vm1434, %vm1435
        %v1437 = vsel %vm1436, %v1428, %v1433
        %v1438 = vmul.f32 %v1421, %v1437
        %v1439 = vperm.slane %v1415, 0
        %v1440 = vmul.f32 %v1438, %v1439
        %v1441 = vperm.slane %v1416, 0
        %v1442 = vadd.f32 %v1440, %v1441
        %v1443 = vld [vmem:[%s10] sm:$0xff]
        %v1444 = vld [vmem:[%s10 + $0x8] sm:$0xff]
        %v1445 = vld [vmem:[%s10 + $0x10] sm:$0xff]
        %v1446 = vld [vmem:[%s10 + $0x18] sm:$0xff]
        %v1447 = vld [vmem:[%s11] sm:$0x1]
        %v1449 = vperm.slane %v1447, 0
        %v1452 = vsel %vm456, %v1442, 0
        %1454 = vmatpush.msra.mxu0 0.0
        %1455 = vmatpush.msra.mxu0 0.0
        %1456 = vmatpush.msra.mxu0 0.0
        %1457 = vmatpush.msra.mxu0 0.0
        %1458 = vmatpush.msra.mxu0 0.0
        %1459 = vmatpush.msra.mxu0 0.0
        %1460 = vmatpush.msra.mxu0 0.0
        %1461 = vmatpush.msra.mxu0 0.0
        %1462 = vmatpush.msra.mxu0 0.0
        %1463 = vmatpush.msra.mxu0 0.0
        %1464 = vmatpush.msra.mxu0 0.0
        %1465 = vmatpush.msra.mxu0 0.0
        %1466 = vmatpush.msra.mxu0 %v1446
        %1467 = vmatpush.msra.mxu0 %v1445
        %1468 = vmatpush.msra.mxu0 %v1444
        %1469 = vmatpush.msra.mxu0 %v1443
        %1470 = vmatmul.f32.gmra.mxu0 %v1452
        %v1471 = vpop.f32.mrf.mxu0
        %v1472 = vadd.f32 %v1449, %v1471
        %1473 = vdwg.mxu0
        %1474 = vmax.xlane.f32.xlu0 %v1472
        %v1475 = vpop.xlane.xlu0 %1474
        %v1476 = vsub.f32 %v1472, %v1475
        %v1477 = vmul.f32 %v1476, 1.442695
        %v1478 = vpow.pop %v1477
        %1479 = vadd.xlane.f32.xlu0 %v1478
        %v1480 = vpop.xlane.xlu0 %1479
        %v1481 = vrcp.pop %v1480
        %v1482 = vmul.f32 %v1480, %v1481
        %v1483 = vsub.f32 1.0, %v1482
        %v1484 = vmul.f32 %v1481, %v1483
        %v1485 = vadd.f32 %v1481, %v1484
        %vm1486 = vweird.f32 %v1480
        %vm1487 = vweird.f32 %v1481
        %vm1488 = vmor %vm1486, %vm1487
        %v1489 = vsel %vm1488, %v1481, %v1485
        %v1490 = vand.u32 2147483647, %v1480
        %vm1491 = vcmp.eq.f32.partialorder %v1490, 8.507059e+37
        %v1492 = vand.u32 %v1480, 2147483648
        %v1493 = vor.u32 1.1754944e-38, %v1492
        %v1494 = vsel %vm1491, %v1493, %v1489
        %v1495 = vmul.f32 %v1478, %v1494
        %1496 = vst [vmem:[%s404] sm:$0xff] %v1495
        %s1497 = sand.u32 %s291, 1
        %s1498 = scalar_lea.sflag [#allocation3], %s1497
        %s1499 = sand.u32 %s291, 1
        %s1500 = smul.addr %s1499, 8
        %s1501 = scalar_lea.vmem [#allocation2], %s1500
        // Predicated region
        $region69: #{bert_lm_forward.1} parent=67 // pred_check
          %p1502 = pneg %p301
        $region70: #{bert_lm_forward.1} parent=67 // pred_check_branch
          %1504 = sbr.rel (%p1502) target = $region72
        $region71: #{bert_lm_forward.1} parent=67 // pred_region
          %1506 = vsyncadd %s1498, 0
          %s1507 = smul.addr %s26, 8
          %s1508 = scalar_lea.hbm %s12, %s1507
          %s1510 = sshll.u32 %s1501, 4
          %s1511 = int_to_ptr.vmem [resolvable:$true] %s1510
          %s1512 = sshll.u32 %s1508, 4
          %s1513 = int_to_ptr.hbm [resolvable:$true] %s1512
          %1515 = dma.vmem_to_hbm [thread:$0]  %s1511, 128, %s1513, %s1498
        $region72: #{bert_lm_forward.1} parent=67 // pred_fallthru
          _
      $region68: #{bert_lm_forward.1} parent=5 // pred_fallthru
        _
      %p1516 = scmp.le.s32.totalorder 2, %s21
      // Predicated region
      $region73: #{bert_lm_forward.1} parent=5 // pred_check
        %p1517 = pneg %p1516
      $region74: #{bert_lm_forward.1} parent=5 // pred_check_branch
        %1519 = sbr.rel (%p1517) target = $region76
      $region75: #{bert_lm_forward.1} parent=5 // pred_region
        %s1520 = ssub.s32 %s21, 2
        // Predicated region
        $region77: #{bert_lm_forward.1} parent=75 // pred_check
          %p1521 = pneg %p307
        $region78: #{bert_lm_forward.1} parent=75 // pred_check_branch
          %1523 = sbr.rel (%p1521) target = $region80
        $region79: #{bert_lm_forward.1} parent=75 // pred_region
          %s1524 = sand.u32 %s292, 1
          %s1525 = scalar_lea.sflag [#allocation3], %s1524
          %s1526 = sand.u32 %s292, 1
          %s1527 = smul.addr %s1526, 8
          %s1528 = scalar_lea.vmem [#allocation2], %s1527
          %1530 = dma.done %s1525, 128
        $region80: #{bert_lm_forward.1} parent=75 // pred_fallthru
          _
      $region76: #{bert_lm_forward.1} parent=5 // pred_fallthru
        _
    $region6: #{bert_lm_forward.1} parent=1 // loop_footer
      %s25 = sadd.s32 1, %s21
    $region7: #{bert_lm_forward.1} parent=1 // loop_footer_branch
      %20 = sbr.rel target = $region3
    $region8: #{bert_lm_forward.1} parent=1 // loop_exit
      _
    %1531 = vsyncpa [#allocation3], 1
    %s1532 = scalar_lea.sflag [#allocation3], 1
    %1533 = vsyncpa %s1532, 1

</llo_original>
